<compile_context>
chip_gen: v7x
topology: tpu7x:2x2x1
jax: 0.10.0
libtpu: 0.0.40
codegen_flags: <defaults>
</compile_context>

<pallas_src>
import math
from functools import partial

import jax
import jax.numpy as jnp
from jax import lax
from jax.experimental import pallas as pl
from jax.experimental.pallas import tpu as pltpu


def _embedding_kernel(t_tile, nt,
                      ids_ref,    # (B, T) int32 token ids, SMEM (scalar prefetch)
                      tok_hbm,    # (V, E) token embedding table, HBM (pl.ANY)
                      pos_ref,    # (t_tile, E) positional rows, VMEM (auto-pipelined)
                      o_ref,      # (1, t_tile, E) output tile, VMEM
                      gbuf,       # (2, t_tile, E) VMEM double-buffered gather buffer
                      sems):      # (2, t_tile) DMA semaphores
    b = pl.program_id(0)
    tb = pl.program_id(1)
    slot = tb % 2

    def gather(tile_idx, dst_slot):
        base = tile_idx * t_tile
        for j in range(t_tile):                      # static, fully unrolled
            tok_id = ids_ref[b, base + j]            # scalar read from SMEM
            pltpu.make_async_copy(
                tok_hbm.at[pl.ds(tok_id, 1), :],     # one (1, E) row from HBM
                gbuf.at[dst_slot, pl.ds(j, 1), :],
                sems.at[dst_slot, j],
            ).start()

    # Prime the pipeline for this batch row (pipeline is per-b, so "parallel"
    # sharding of the batch axis across TensorCores stays correct).
    @pl.when(tb == 0)
    def _prime():
        gather(0, 0)

    # Prefetch next token tile into the other slot while we consume this one.
    @pl.when(tb + 1 < nt)
    def _prefetch_next():
        gather(tb + 1, (tb + 1) % 2)

    # Wait for the current tile's row gathers.
    for j in range(t_tile):
        pltpu.make_async_copy(
            tok_hbm.at[pl.ds(0, 1), :],              # dummy src (shape only)
            gbuf.at[slot, pl.ds(j, 1), :],
            sems.at[slot, j],
        ).wait()

    tok_tile = gbuf[slot]                            # (t_tile, E)
    o_ref[0] = (tok_tile + pos_ref[...]).astype(o_ref.dtype)


def embedding_forward(ids, tok_emb, pos_emb, *, t_tile=None):
    """ids: (B, T) int, tok_emb: (V, E), pos_emb: (block_size, E) -> (B, T, E)."""
    B, T = ids.shape
    V, E = tok_emb.shape
    block_size = pos_emb.shape[0]
    assert T <= block_size, (
        f"Cannot forward sequence of length {T}, block size is only {block_size}")
    assert E % 128 == 0, "n_embd must be a multiple of 128 for lane-dense tiles"

    if t_tile is None:
        t_tile = min(T, 128)
    assert T % t_tile == 0 and t_tile % 8 == 0
    nt = T // t_tile

    grid_spec = pltpu.PrefetchScalarGridSpec(
        num_scalar_prefetch=1,                       # ids -> SMEM, fed to index_maps/kernel
        grid=(B, nt),
        in_specs=[
            pl.BlockSpec(memory_space=pl.ANY),       # tok_emb stays in HBM; manual DMA gather
            pl.BlockSpec((t_tile, E), lambda b, tb, ids: (tb, 0)),   # pos rows (contiguous)
        ],
        out_specs=pl.BlockSpec((1, t_tile, E), lambda b, tb, ids: (b, tb, 0)),
        scratch_shapes=[
            pltpu.VMEM((2, t_tile, E), tok_emb.dtype),
            pltpu.SemaphoreType.DMA((2, t_tile)),
        ],
    )

    out = pl.pallas_call(
        partial(_embedding_kernel, t_tile, nt),
        out_shape=jax.ShapeDtypeStruct((B, T, E), tok_emb.dtype),
        grid_spec=grid_spec,
        compiler_params=pltpu.CompilerParams(
            dimension_semantics=("parallel", "arbitrary")),
    )(ids.astype(jnp.int32), tok_emb, pos_emb)

    # TODO(synk): nn.Dropout(p=0.2) is identity in eval mode; training-mode
    # dropout (pltpu.prng_seed + stateful_bernoulli mask) is not implemented.
    return out


if __name__ == "__main__":
    # small config: batch=2, seq=8, vocab=512, block_size=16, n_embd=128
    vocab_size, block_size, n_embd = 512, 16, 128
    B, T = 2, 8

    key = jax.random.PRNGKey(0)
    k_ids, k_tok, k_pos = jax.random.split(key, 3)
    ids = jax.random.randint(k_ids, (B, T), 0, vocab_size, dtype=jnp.int32)
    tok_emb = 0.02 * jax.random.normal(k_tok, (vocab_size, n_embd), jnp.float32)
    pos_emb = 0.02 * jax.random.normal(k_pos, (block_size, n_embd), jnp.float32)

    fwd = jax.jit(embedding_forward)
    y = fwd(ids, tok_emb, pos_emb)
    jax.block_until_ready(y)

    # pure-JAX reference
    y_ref = tok_emb[ids] + pos_emb[jnp.arange(T)][None, :, :]

    assert y.shape == (B, T, n_embd)
    assert jnp.allclose(y, y_ref, atol=1e-6, rtol=1e-6), "mismatch vs reference"
    print("KERNEL_OK")
</pallas_src>

<mosaic_0001>
module attributes {stable_mosaic.version = 11 : i64} {
  func.func @_embedding_kernel(%arg0: i32, %arg1: i32, %arg2: memref<2x8xi32, #tpu.memory_space<smem>>, %arg3: memref<512x128xf32, #tpu.memory_space<any>>, %arg4: memref<8x128xf32, #tpu.memory_space<vmem>>, %arg5: memref<1x8x128xf32, #tpu.memory_space<vmem>>, %arg6: memref<2x8x128xf32, #tpu.memory_space<vmem>>, %arg7: memref<2x8x!tpu.dma_semaphore, #tpu.memory_space<semaphore_mem>>) attributes {dimension_semantics = [#tpu.dimension_semantics<parallel>, #tpu.dimension_semantics<arbitrary>], iteration_bounds = array<i64: 2, 1>, scalar_prefetch = 1 : i64, scratch_operands = 2 : i64, tpu.core_type = #tpu.core_type<tc>, window_params = [{}, {transform_indices = @transform_1, window_bounds = array<i64: 8, 128>}, {transform_indices = @transform_2, window_bounds = array<i64: 1, 8, 128>}]} {
    %c2_i32 = arith.constant 2 : i32
    %c0_i32 = arith.constant 0 : i32
    %0 = arith.cmpi eq, %c2_i32, %c0_i32 : i32
    %c1_i32 = arith.constant 1 : i32
    %1 = arith.select %0, %c1_i32, %c2_i32 : i32
    %2 = arith.remsi %arg1, %1 : i32
    %c0_i32_0 = arith.constant 0 : i32
    %3 = arith.cmpi ne, %2, %c0_i32_0 : i32
    %c0_i32_1 = arith.constant 0 : i32
    %4 = arith.cmpi slt, %2, %c0_i32_1 : i32
    %c0_i32_2 = arith.constant 0 : i32
    %5 = arith.cmpi slt, %1, %c0_i32_2 : i32
    %6 = arith.xori %4, %5 : i1
    %7 = arith.andi %6, %3 : i1
    %8 = arith.addi %2, %1 : i32
    %9 = arith.select %7, %8, %2 : i32
    %c0_i32_3 = arith.constant 0 : i32
    %10 = arith.cmpi eq, %arg1, %c0_i32_3 : i32
    %11 = arith.extui %10 : i1 to i32
    %c0_i32_4 = arith.constant 0 : i32
    %12 = arith.cmpi ne, %11, %c0_i32_4 : i32
    scf.if %12 {
      %65 = arith.index_cast %arg0 : i32 to index
      %c0_49 = arith.constant 0 : index
      %66 = memref.load %arg2[%65, %c0_49] : memref<2x8xi32, #tpu.memory_space<smem>>
      %c0_i32_50 = arith.constant 0 : i32
      %c0_i32_51 = arith.constant 0 : i32
      %c0_i32_52 = arith.constant 0 : i32
      %c0_i32_53 = arith.constant 0 : i32
      %67 = tpu.memref_slice %arg3[%66, %c0_i32_53] : memref<512x128xf32, #tpu.memory_space<any>> -> memref<1x128xf32, #tpu.memory_space<any>>
      %c0_i32_54 = arith.constant 0 : i32
      %c0_i32_55 = arith.constant 0 : i32
      %68 = tpu.memref_slice %arg6[%c0_i32_50, %c0_i32_54, %c0_i32_55] : memref<2x8x128xf32, #tpu.memory_space<vmem>> -> memref<1x1x128xf32, #tpu.memory_space<vmem>>
      %69 = tpu.memref_squeeze %68 : memref<1x1x128xf32, #tpu.memory_space<vmem>> -> memref<1x128xf32, #tpu.memory_space<vmem>>
      %70 = tpu.memref_slice %arg7[%c0_i32_51, %c0_i32_52] : memref<2x8x!tpu.dma_semaphore, #tpu.memory_space<semaphore_mem>> -> memref<1x1x!tpu.dma_semaphore, #tpu.memory_space<semaphore_mem>>
      %71 = tpu.memref_squeeze %70 : memref<1x1x!tpu.dma_semaphore, #tpu.memory_space<semaphore_mem>> -> memref<!tpu.dma_semaphore, #tpu.memory_space<semaphore_mem>>
      tpu.enqueue_dma source(%67 : memref<1x128xf32, #tpu.memory_space<any>>) target(%69 : memref<1x128xf32, #tpu.memory_space<vmem>>) target_semaphore(%71 : memref<!tpu.dma_semaphore, #tpu.memory_space<semaphore_mem>>)
      %72 = arith.index_cast %arg0 : i32 to index
      %c1 = arith.constant 1 : index
      %73 = memref.load %arg2[%72, %c1] : memref<2x8xi32, #tpu.memory_space<smem>>
      %c0_i32_56 = arith.constant 0 : i32
      %c0_i32_57 = arith.constant 0 : i32
      %c1_i32_58 = arith.constant 1 : i32
      %c0_i32_59 = arith.constant 0 : i32
      %74 = tpu.memref_slice %arg3[%73, %c0_i32_59] : memref<512x128xf32, #tpu.memory_space<any>> -> memref<1x128xf32, #tpu.memory_space<any>>
      %c1_i32_60 = arith.constant 1 : i32
      %c0_i32_61 = arith.constant 0 : i32
      %75 = tpu.memref_slice %arg6[%c0_i32_56, %c1_i32_60, %c0_i32_61] : memref<2x8x128xf32, #tpu.memory_space<vmem>> -> memref<1x1x128xf32, #tpu.memory_space<vmem>>
      %76 = tpu.memref_squeeze %75 : memref<1x1x128xf32, #tpu.memory_space<vmem>> -> memref<1x128xf32, #tpu.memory_space<vmem>>
      %77 = tpu.memref_slice %arg7[%c0_i32_57, %c1_i32_58] : memref<2x8x!tpu.dma_semaphore, #tpu.memory_space<semaphore_mem>> -> memref<1x1x!tpu.dma_semaphore, #tpu.memory_space<semaphore_mem>>
      %78 = tpu.memref_squeeze %77 : memref<1x1x!tpu.dma_semaphore, #tpu.memory_space<semaphore_mem>> -> memref<!tpu.dma_semaphore, #tpu.memory_space<semaphore_mem>>
      tpu.enqueue_dma source(%74 : memref<1x128xf32, #tpu.memory_space<any>>) target(%76 : memref<1x128xf32, #tpu.memory_space<vmem>>) target_semaphore(%78 : memref<!tpu.dma_semaphore, #tpu.memory_space<semaphore_mem>>)
      %79 = arith.index_cast %arg0 : i32 to index
      %c2 = arith.constant 2 : index
      %80 = memref.load %arg2[%79, %c2] : memref<2x8xi32, #tpu.memory_space<smem>>
      %c0_i32_62 = arith.constant 0 : i32
      %c0_i32_63 = arith.constant 0 : i32
      %c2_i32_64 = arith.constant 2 : i32
      %c0_i32_65 = arith.constant 0 : i32
      %81 = tpu.memref_slice %arg3[%80, %c0_i32_65] : memref<512x128xf32, #tpu.memory_space<any>> -> memref<1x128xf32, #tpu.memory_space<any>>
      %c2_i32_66 = arith.constant 2 : i32
      %c0_i32_67 = arith.constant 0 : i32
      %82 = tpu.memref_slice %arg6[%c0_i32_62, %c2_i32_66, %c0_i32_67] : memref<2x8x128xf32, #tpu.memory_space<vmem>> -> memref<1x1x128xf32, #tpu.memory_space<vmem>>
      %83 = tpu.memref_squeeze %82 : memref<1x1x128xf32, #tpu.memory_space<vmem>> -> memref<1x128xf32, #tpu.memory_space<vmem>>
      %84 = tpu.memref_slice %arg7[%c0_i32_63, %c2_i32_64] : memref<2x8x!tpu.dma_semaphore, #tpu.memory_space<semaphore_mem>> -> memref<1x1x!tpu.dma_semaphore, #tpu.memory_space<semaphore_mem>>
      %85 = tpu.memref_squeeze %84 : memref<1x1x!tpu.dma_semaphore, #tpu.memory_space<semaphore_mem>> -> memref<!tpu.dma_semaphore, #tpu.memory_space<semaphore_mem>>
      tpu.enqueue_dma source(%81 : memref<1x128xf32, #tpu.memory_space<any>>) target(%83 : memref<1x128xf32, #tpu.memory_space<vmem>>) target_semaphore(%85 : memref<!tpu.dma_semaphore, #tpu.memory_space<semaphore_mem>>)
      %86 = arith.index_cast %arg0 : i32 to index
      %c3 = arith.constant 3 : index
      %87 = memref.load %arg2[%86, %c3] : memref<2x8xi32, #tpu.memory_space<smem>>
      %c0_i32_68 = arith.constant 0 : i32
      %c0_i32_69 = arith.constant 0 : i32
      %c3_i32_70 = arith.constant 3 : i32
      %c0_i32_71 = arith.constant 0 : i32
      %88 = tpu.memref_slice %arg3[%87, %c0_i32_71] : memref<512x128xf32, #tpu.memory_space<any>> -> memref<1x128xf32, #tpu.memory_space<any>>
      %c3_i32_72 = arith.constant 3 : i32
      %c0_i32_73 = arith.constant 0 : i32
      %89 = tpu.memref_slice %arg6[%c0_i32_68, %c3_i32_72, %c0_i32_73] : memref<2x8x128xf32, #tpu.memory_space<vmem>> -> memref<1x1x128xf32, #tpu.memory_space<vmem>>
      %90 = tpu.memref_squeeze %89 : memref<1x1x128xf32, #tpu.memory_space<vmem>> -> memref<1x128xf32, #tpu.memory_space<vmem>>
      %91 = tpu.memref_slice %arg7[%c0_i32_69, %c3_i32_70] : memref<2x8x!tpu.dma_semaphore, #tpu.memory_space<semaphore_mem>> -> memref<1x1x!tpu.dma_semaphore, #tpu.memory_space<semaphore_mem>>
      %92 = tpu.memref_squeeze %91 : memref<1x1x!tpu.dma_semaphore, #tpu.memory_space<semaphore_mem>> -> memref<!tpu.dma_semaphore, #tpu.memory_space<semaphore_mem>>
      tpu.enqueue_dma source(%88 : memref<1x128xf32, #tpu.memory_space<any>>) target(%90 : memref<1x128xf32, #tpu.memory_space<vmem>>) target_semaphore(%92 : memref<!tpu.dma_semaphore, #tpu.memory_space<semaphore_mem>>)
      %93 = arith.index_cast %arg0 : i32 to index
      %c4 = arith.constant 4 : index
      %94 = memref.load %arg2[%93, %c4] : memref<2x8xi32, #tpu.memory_space<smem>>
      %c0_i32_74 = arith.constant 0 : i32
      %c0_i32_75 = arith.constant 0 : i32
      %c4_i32_76 = arith.constant 4 : i32
      %c0_i32_77 = arith.constant 0 : i32
      %95 = tpu.memref_slice %arg3[%94, %c0_i32_77] : memref<512x128xf32, #tpu.memory_space<any>> -> memref<1x128xf32, #tpu.memory_space<any>>
      %c4_i32_78 = arith.constant 4 : i32
      %c0_i32_79 = arith.constant 0 : i32
      %96 = tpu.memref_slice %arg6[%c0_i32_74, %c4_i32_78, %c0_i32_79] : memref<2x8x128xf32, #tpu.memory_space<vmem>> -> memref<1x1x128xf32, #tpu.memory_space<vmem>>
      %97 = tpu.memref_squeeze %96 : memref<1x1x128xf32, #tpu.memory_space<vmem>> -> memref<1x128xf32, #tpu.memory_space<vmem>>
      %98 = tpu.memref_slice %arg7[%c0_i32_75, %c4_i32_76] : memref<2x8x!tpu.dma_semaphore, #tpu.memory_space<semaphore_mem>> -> memref<1x1x!tpu.dma_semaphore, #tpu.memory_space<semaphore_mem>>
      %99 = tpu.memref_squeeze %98 : memref<1x1x!tpu.dma_semaphore, #tpu.memory_space<semaphore_mem>> -> memref<!tpu.dma_semaphore, #tpu.memory_space<semaphore_mem>>
      tpu.enqueue_dma source(%95 : memref<1x128xf32, #tpu.memory_space<any>>) target(%97 : memref<1x128xf32, #tpu.memory_space<vmem>>) target_semaphore(%99 : memref<!tpu.dma_semaphore, #tpu.memory_space<semaphore_mem>>)
      %100 = arith.index_cast %arg0 : i32 to index
      %c5 = arith.constant 5 : index
      %101 = memref.load %arg2[%100, %c5] : memref<2x8xi32, #tpu.memory_space<smem>>
      %c0_i32_80 = arith.constant 0 : i32
      %c0_i32_81 = arith.constant 0 : i32
      %c5_i32_82 = arith.constant 5 : i32
      %c0_i32_83 = arith.constant 0 : i32
      %102 = tpu.memref_slice %arg3[%101, %c0_i32_83] : memref<512x128xf32, #tpu.memory_space<any>> -> memref<1x128xf32, #tpu.memory_space<any>>
      %c5_i32_84 = arith.constant 5 : i32
      %c0_i32_85 = arith.constant 0 : i32
      %103 = tpu.memref_slice %arg6[%c0_i32_80, %c5_i32_84, %c0_i32_85] : memref<2x8x128xf32, #tpu.memory_space<vmem>> -> memref<1x1x128xf32, #tpu.memory_space<vmem>>
      %104 = tpu.memref_squeeze %103 : memref<1x1x128xf32, #tpu.memory_space<vmem>> -> memref<1x128xf32, #tpu.memory_space<vmem>>
      %105 = tpu.memref_slice %arg7[%c0_i32_81, %c5_i32_82] : memref<2x8x!tpu.dma_semaphore, #tpu.memory_space<semaphore_mem>> -> memref<1x1x!tpu.dma_semaphore, #tpu.memory_space<semaphore_mem>>
      %106 = tpu.memref_squeeze %105 : memref<1x1x!tpu.dma_semaphore, #tpu.memory_space<semaphore_mem>> -> memref<!tpu.dma_semaphore, #tpu.memory_space<semaphore_mem>>
      tpu.enqueue_dma source(%102 : memref<1x128xf32, #tpu.memory_space<any>>) target(%104 : memref<1x128xf32, #tpu.memory_space<vmem>>) target_semaphore(%106 : memref<!tpu.dma_semaphore, #tpu.memory_space<semaphore_mem>>)
      %107 = arith.index_cast %arg0 : i32 to index
      %c6 = arith.constant 6 : index
      %108 = memref.load %arg2[%107, %c6] : memref<2x8xi32, #tpu.memory_space<smem>>
      %c0_i32_86 = arith.constant 0 : i32
      %c0_i32_87 = arith.constant 0 : i32
      %c6_i32_88 = arith.constant 6 : i32
      %c0_i32_89 = arith.constant 0 : i32
      %109 = tpu.memref_slice %arg3[%108, %c0_i32_89] : memref<512x128xf32, #tpu.memory_space<any>> -> memref<1x128xf32, #tpu.memory_space<any>>
      %c6_i32_90 = arith.constant 6 : i32
      %c0_i32_91 = arith.constant 0 : i32
      %110 = tpu.memref_slice %arg6[%c0_i32_86, %c6_i32_90, %c0_i32_91] : memref<2x8x128xf32, #tpu.memory_space<vmem>> -> memref<1x1x128xf32, #tpu.memory_space<vmem>>
      %111 = tpu.memref_squeeze %110 : memref<1x1x128xf32, #tpu.memory_space<vmem>> -> memref<1x128xf32, #tpu.memory_space<vmem>>
      %112 = tpu.memref_slice %arg7[%c0_i32_87, %c6_i32_88] : memref<2x8x!tpu.dma_semaphore, #tpu.memory_space<semaphore_mem>> -> memref<1x1x!tpu.dma_semaphore, #tpu.memory_space<semaphore_mem>>
      %113 = tpu.memref_squeeze %112 : memref<1x1x!tpu.dma_semaphore, #tpu.memory_space<semaphore_mem>> -> memref<!tpu.dma_semaphore, #tpu.memory_space<semaphore_mem>>
      tpu.enqueue_dma source(%109 : memref<1x128xf32, #tpu.memory_space<any>>) target(%111 : memref<1x128xf32, #tpu.memory_space<vmem>>) target_semaphore(%113 : memref<!tpu.dma_semaphore, #tpu.memory_space<semaphore_mem>>)
      %114 = arith.index_cast %arg0 : i32 to index
      %c7 = arith.constant 7 : index
      %115 = memref.load %arg2[%114, %c7] : memref<2x8xi32, #tpu.memory_space<smem>>
      %c0_i32_92 = arith.constant 0 : i32
      %c0_i32_93 = arith.constant 0 : i32
      %c7_i32_94 = arith.constant 7 : i32
      %c0_i32_95 = arith.constant 0 : i32
      %116 = tpu.memref_slice %arg3[%115, %c0_i32_95] : memref<512x128xf32, #tpu.memory_space<any>> -> memref<1x128xf32, #tpu.memory_space<any>>
      %c7_i32_96 = arith.constant 7 : i32
      %c0_i32_97 = arith.constant 0 : i32
      %117 = tpu.memref_slice %arg6[%c0_i32_92, %c7_i32_96, %c0_i32_97] : memref<2x8x128xf32, #tpu.memory_space<vmem>> -> memref<1x1x128xf32, #tpu.memory_space<vmem>>
      %118 = tpu.memref_squeeze %117 : memref<1x1x128xf32, #tpu.memory_space<vmem>> -> memref<1x128xf32, #tpu.memory_space<vmem>>
      %119 = tpu.memref_slice %arg7[%c0_i32_93, %c7_i32_94] : memref<2x8x!tpu.dma_semaphore, #tpu.memory_space<semaphore_mem>> -> memref<1x1x!tpu.dma_semaphore, #tpu.memory_space<semaphore_mem>>
      %120 = tpu.memref_squeeze %119 : memref<1x1x!tpu.dma_semaphore, #tpu.memory_space<semaphore_mem>> -> memref<!tpu.dma_semaphore, #tpu.memory_space<semaphore_mem>>
      tpu.enqueue_dma source(%116 : memref<1x128xf32, #tpu.memory_space<any>>) target(%118 : memref<1x128xf32, #tpu.memory_space<vmem>>) target_semaphore(%120 : memref<!tpu.dma_semaphore, #tpu.memory_space<semaphore_mem>>)
    } else {
    }
    %c1_i32_5 = arith.constant 1 : i32
    %13 = arith.addi %arg1, %c1_i32_5 : i32
    %c1_i32_6 = arith.constant 1 : i32
    %14 = arith.cmpi slt, %13, %c1_i32_6 : i32
    %15 = arith.extui %14 : i1 to i32
    %c0_i32_7 = arith.constant 0 : i32
    %16 = arith.cmpi ne, %15, %c0_i32_7 : i32
    scf.if %16 {
      %c1_i32_49 = arith.constant 1 : i32
      %65 = arith.addi %arg1, %c1_i32_49 : i32
      %c1_i32_50 = arith.constant 1 : i32
      %66 = arith.addi %arg1, %c1_i32_50 : i32
      %c2_i32_51 = arith.constant 2 : i32
      %c0_i32_52 = arith.constant 0 : i32
      %67 = arith.cmpi eq, %c2_i32_51, %c0_i32_52 : i32
      %c1_i32_53 = arith.constant 1 : i32
      %68 = arith.select %67, %c1_i32_53, %c2_i32_51 : i32
      %69 = arith.remsi %66, %68 : i32
      %c0_i32_54 = arith.constant 0 : i32
      %70 = arith.cmpi ne, %69, %c0_i32_54 : i32
      %c0_i32_55 = arith.constant 0 : i32
      %71 = arith.cmpi slt, %69, %c0_i32_55 : i32
      %c0_i32_56 = arith.constant 0 : i32
      %72 = arith.cmpi slt, %68, %c0_i32_56 : i32
      %73 = arith.xori %71, %72 : i1
      %74 = arith.andi %73, %70 : i1
      %75 = arith.addi %69, %68 : i32
      %76 = arith.select %74, %75, %69 : i32
      %c8_i32 = arith.constant 8 : i32
      %77 = arith.muli %65, %c8_i32 : i32
      %c0_i32_57 = arith.constant 0 : i32
      %78 = arith.addi %77, %c0_i32_57 : i32
      %79 = arith.index_cast %arg0 : i32 to index
      %80 = arith.index_cast %78 : i32 to index
      %81 = memref.load %arg2[%79, %80] : memref<2x8xi32, #tpu.memory_space<smem>>
      %c0_i32_58 = arith.constant 0 : i32
      %c0_i32_59 = arith.constant 0 : i32
      %82 = tpu.memref_slice %arg3[%81, %c0_i32_59] : memref<512x128xf32, #tpu.memory_space<any>> -> memref<1x128xf32, #tpu.memory_space<any>>
      %c0_i32_60 = arith.constant 0 : i32
      %c0_i32_61 = arith.constant 0 : i32
      %83 = tpu.memref_slice %arg6[%76, %c0_i32_60, %c0_i32_61] : memref<2x8x128xf32, #tpu.memory_space<vmem>> -> memref<1x1x128xf32, #tpu.memory_space<vmem>>
      %84 = tpu.memref_squeeze %83 : memref<1x1x128xf32, #tpu.memory_space<vmem>> -> memref<1x128xf32, #tpu.memory_space<vmem>>
      %85 = tpu.memref_slice %arg7[%76, %c0_i32_58] : memref<2x8x!tpu.dma_semaphore, #tpu.memory_space<semaphore_mem>> -> memref<1x1x!tpu.dma_semaphore, #tpu.memory_space<semaphore_mem>>
      %86 = tpu.memref_squeeze %85 : memref<1x1x!tpu.dma_semaphore, #tpu.memory_space<semaphore_mem>> -> memref<!tpu.dma_semaphore, #tpu.memory_space<semaphore_mem>>
      tpu.enqueue_dma source(%82 : memref<1x128xf32, #tpu.memory_space<any>>) target(%84 : memref<1x128xf32, #tpu.memory_space<vmem>>) target_semaphore(%86 : memref<!tpu.dma_semaphore, #tpu.memory_space<semaphore_mem>>)
      %c1_i32_62 = arith.constant 1 : i32
      %87 = arith.addi %77, %c1_i32_62 : i32
      %88 = arith.index_cast %arg0 : i32 to index
      %89 = arith.index_cast %87 : i32 to index
      %90 = memref.load %arg2[%88, %89] : memref<2x8xi32, #tpu.memory_space<smem>>
      %c1_i32_63 = arith.constant 1 : i32
      %c0_i32_64 = arith.constant 0 : i32
      %91 = tpu.memref_slice %arg3[%90, %c0_i32_64] : memref<512x128xf32, #tpu.memory_space<any>> -> memref<1x128xf32, #tpu.memory_space<any>>
      %c1_i32_65 = arith.constant 1 : i32
      %c0_i32_66 = arith.constant 0 : i32
      %92 = tpu.memref_slice %arg6[%76, %c1_i32_65, %c0_i32_66] : memref<2x8x128xf32, #tpu.memory_space<vmem>> -> memref<1x1x128xf32, #tpu.memory_space<vmem>>
      %93 = tpu.memref_squeeze %92 : memref<1x1x128xf32, #tpu.memory_space<vmem>> -> memref<1x128xf32, #tpu.memory_space<vmem>>
      %94 = tpu.memref_slice %arg7[%76, %c1_i32_63] : memref<2x8x!tpu.dma_semaphore, #tpu.memory_space<semaphore_mem>> -> memref<1x1x!tpu.dma_semaphore, #tpu.memory_space<semaphore_mem>>
      %95 = tpu.memref_squeeze %94 : memref<1x1x!tpu.dma_semaphore, #tpu.memory_space<semaphore_mem>> -> memref<!tpu.dma_semaphore, #tpu.memory_space<semaphore_mem>>
      tpu.enqueue_dma source(%91 : memref<1x128xf32, #tpu.memory_space<any>>) target(%93 : memref<1x128xf32, #tpu.memory_space<vmem>>) target_semaphore(%95 : memref<!tpu.dma_semaphore, #tpu.memory_space<semaphore_mem>>)
      %c2_i32_67 = arith.constant 2 : i32
      %96 = arith.addi %77, %c2_i32_67 : i32
      %97 = arith.index_cast %arg0 : i32 to index
      %98 = arith.index_cast %96 : i32 to index
      %99 = memref.load %arg2[%97, %98] : memref<2x8xi32, #tpu.memory_space<smem>>
      %c2_i32_68 = arith.constant 2 : i32
      %c0_i32_69 = arith.constant 0 : i32
      %100 = tpu.memref_slice %arg3[%99, %c0_i32_69] : memref<512x128xf32, #tpu.memory_space<any>> -> memref<1x128xf32, #tpu.memory_space<any>>
      %c2_i32_70 = arith.constant 2 : i32
      %c0_i32_71 = arith.constant 0 : i32
      %101 = tpu.memref_slice %arg6[%76, %c2_i32_70, %c0_i32_71] : memref<2x8x128xf32, #tpu.memory_space<vmem>> -> memref<1x1x128xf32, #tpu.memory_space<vmem>>
      %102 = tpu.memref_squeeze %101 : memref<1x1x128xf32, #tpu.memory_space<vmem>> -> memref<1x128xf32, #tpu.memory_space<vmem>>
      %103 = tpu.memref_slice %arg7[%76, %c2_i32_68] : memref<2x8x!tpu.dma_semaphore, #tpu.memory_space<semaphore_mem>> -> memref<1x1x!tpu.dma_semaphore, #tpu.memory_space<semaphore_mem>>
      %104 = tpu.memref_squeeze %103 : memref<1x1x!tpu.dma_semaphore, #tpu.memory_space<semaphore_mem>> -> memref<!tpu.dma_semaphore, #tpu.memory_space<semaphore_mem>>
      tpu.enqueue_dma source(%100 : memref<1x128xf32, #tpu.memory_space<any>>) target(%102 : memref<1x128xf32, #tpu.memory_space<vmem>>) target_semaphore(%104 : memref<!tpu.dma_semaphore, #tpu.memory_space<semaphore_mem>>)
      %c3_i32_72 = arith.constant 3 : i32
      %105 = arith.addi %77, %c3_i32_72 : i32
      %106 = arith.index_cast %arg0 : i32 to index
      %107 = arith.index_cast %105 : i32 to index
      %108 = memref.load %arg2[%106, %107] : memref<2x8xi32, #tpu.memory_space<smem>>
      %c3_i32_73 = arith.constant 3 : i32
      %c0_i32_74 = arith.constant 0 : i32
      %109 = tpu.memref_slice %arg3[%108, %c0_i32_74] : memref<512x128xf32, #tpu.memory_space<any>> -> memref<1x128xf32, #tpu.memory_space<any>>
      %c3_i32_75 = arith.constant 3 : i32
      %c0_i32_76 = arith.constant 0 : i32
      %110 = tpu.memref_slice %arg6[%76, %c3_i32_75, %c0_i32_76] : memref<2x8x128xf32, #tpu.memory_space<vmem>> -> memref<1x1x128xf32, #tpu.memory_space<vmem>>
      %111 = tpu.memref_squeeze %110 : memref<1x1x128xf32, #tpu.memory_space<vmem>> -> memref<1x128xf32, #tpu.memory_space<vmem>>
      %112 = tpu.memref_slice %arg7[%76, %c3_i32_73] : memref<2x8x!tpu.dma_semaphore, #tpu.memory_space<semaphore_mem>> -> memref<1x1x!tpu.dma_semaphore, #tpu.memory_space<semaphore_mem>>
      %113 = tpu.memref_squeeze %112 : memref<1x1x!tpu.dma_semaphore, #tpu.memory_space<semaphore_mem>> -> memref<!tpu.dma_semaphore, #tpu.memory_space<semaphore_mem>>
      tpu.enqueue_dma source(%109 : memref<1x128xf32, #tpu.memory_space<any>>) target(%111 : memref<1x128xf32, #tpu.memory_space<vmem>>) target_semaphore(%113 : memref<!tpu.dma_semaphore, #tpu.memory_space<semaphore_mem>>)
      %c4_i32_77 = arith.constant 4 : i32
      %114 = arith.addi %77, %c4_i32_77 : i32
      %115 = arith.index_cast %arg0 : i32 to index
      %116 = arith.index_cast %114 : i32 to index
      %117 = memref.load %arg2[%115, %116] : memref<2x8xi32, #tpu.memory_space<smem>>
      %c4_i32_78 = arith.constant 4 : i32
      %c0_i32_79 = arith.constant 0 : i32
      %118 = tpu.memref_slice %arg3[%117, %c0_i32_79] : memref<512x128xf32, #tpu.memory_space<any>> -> memref<1x128xf32, #tpu.memory_space<any>>
      %c4_i32_80 = arith.constant 4 : i32
      %c0_i32_81 = arith.constant 0 : i32
      %119 = tpu.memref_slice %arg6[%76, %c4_i32_80, %c0_i32_81] : memref<2x8x128xf32, #tpu.memory_space<vmem>> -> memref<1x1x128xf32, #tpu.memory_space<vmem>>
      %120 = tpu.memref_squeeze %119 : memref<1x1x128xf32, #tpu.memory_space<vmem>> -> memref<1x128xf32, #tpu.memory_space<vmem>>
      %121 = tpu.memref_slice %arg7[%76, %c4_i32_78] : memref<2x8x!tpu.dma_semaphore, #tpu.memory_space<semaphore_mem>> -> memref<1x1x!tpu.dma_semaphore, #tpu.memory_space<semaphore_mem>>
      %122 = tpu.memref_squeeze %121 : memref<1x1x!tpu.dma_semaphore, #tpu.memory_space<semaphore_mem>> -> memref<!tpu.dma_semaphore, #tpu.memory_space<semaphore_mem>>
      tpu.enqueue_dma source(%118 : memref<1x128xf32, #tpu.memory_space<any>>) target(%120 : memref<1x128xf32, #tpu.memory_space<vmem>>) target_semaphore(%122 : memref<!tpu.dma_semaphore, #tpu.memory_space<semaphore_mem>>)
      %c5_i32_82 = arith.constant 5 : i32
      %123 = arith.addi %77, %c5_i32_82 : i32
      %124 = arith.index_cast %arg0 : i32 to index
      %125 = arith.index_cast %123 : i32 to index
      %126 = memref.load %arg2[%124, %125] : memref<2x8xi32, #tpu.memory_space<smem>>
      %c5_i32_83 = arith.constant 5 : i32
      %c0_i32_84 = arith.constant 0 : i32
      %127 = tpu.memref_slice %arg3[%126, %c0_i32_84] : memref<512x128xf32, #tpu.memory_space<any>> -> memref<1x128xf32, #tpu.memory_space<any>>
      %c5_i32_85 = arith.constant 5 : i32
      %c0_i32_86 = arith.constant 0 : i32
      %128 = tpu.memref_slice %arg6[%76, %c5_i32_85, %c0_i32_86] : memref<2x8x128xf32, #tpu.memory_space<vmem>> -> memref<1x1x128xf32, #tpu.memory_space<vmem>>
      %129 = tpu.memref_squeeze %128 : memref<1x1x128xf32, #tpu.memory_space<vmem>> -> memref<1x128xf32, #tpu.memory_space<vmem>>
      %130 = tpu.memref_slice %arg7[%76, %c5_i32_83] : memref<2x8x!tpu.dma_semaphore, #tpu.memory_space<semaphore_mem>> -> memref<1x1x!tpu.dma_semaphore, #tpu.memory_space<semaphore_mem>>
      %131 = tpu.memref_squeeze %130 : memref<1x1x!tpu.dma_semaphore, #tpu.memory_space<semaphore_mem>> -> memref<!tpu.dma_semaphore, #tpu.memory_space<semaphore_mem>>
      tpu.enqueue_dma source(%127 : memref<1x128xf32, #tpu.memory_space<any>>) target(%129 : memref<1x128xf32, #tpu.memory_space<vmem>>) target_semaphore(%131 : memref<!tpu.dma_semaphore, #tpu.memory_space<semaphore_mem>>)
      %c6_i32_87 = arith.constant 6 : i32
      %132 = arith.addi %77, %c6_i32_87 : i32
      %133 = arith.index_cast %arg0 : i32 to index
      %134 = arith.index_cast %132 : i32 to index
      %135 = memref.load %arg2[%133, %134] : memref<2x8xi32, #tpu.memory_space<smem>>
      %c6_i32_88 = arith.constant 6 : i32
      %c0_i32_89 = arith.constant 0 : i32
      %136 = tpu.memref_slice %arg3[%135, %c0_i32_89] : memref<512x128xf32, #tpu.memory_space<any>> -> memref<1x128xf32, #tpu.memory_space<any>>
      %c6_i32_90 = arith.constant 6 : i32
      %c0_i32_91 = arith.constant 0 : i32
      %137 = tpu.memref_slice %arg6[%76, %c6_i32_90, %c0_i32_91] : memref<2x8x128xf32, #tpu.memory_space<vmem>> -> memref<1x1x128xf32, #tpu.memory_space<vmem>>
      %138 = tpu.memref_squeeze %137 : memref<1x1x128xf32, #tpu.memory_space<vmem>> -> memref<1x128xf32, #tpu.memory_space<vmem>>
      %139 = tpu.memref_slice %arg7[%76, %c6_i32_88] : memref<2x8x!tpu.dma_semaphore, #tpu.memory_space<semaphore_mem>> -> memref<1x1x!tpu.dma_semaphore, #tpu.memory_space<semaphore_mem>>
      %140 = tpu.memref_squeeze %139 : memref<1x1x!tpu.dma_semaphore, #tpu.memory_space<semaphore_mem>> -> memref<!tpu.dma_semaphore, #tpu.memory_space<semaphore_mem>>
      tpu.enqueue_dma source(%136 : memref<1x128xf32, #tpu.memory_space<any>>) target(%138 : memref<1x128xf32, #tpu.memory_space<vmem>>) target_semaphore(%140 : memref<!tpu.dma_semaphore, #tpu.memory_space<semaphore_mem>>)
      %c7_i32_92 = arith.constant 7 : i32
      %141 = arith.addi %77, %c7_i32_92 : i32
      %142 = arith.index_cast %arg0 : i32 to index
      %143 = arith.index_cast %141 : i32 to index
      %144 = memref.load %arg2[%142, %143] : memref<2x8xi32, #tpu.memory_space<smem>>
      %c7_i32_93 = arith.constant 7 : i32
      %c0_i32_94 = arith.constant 0 : i32
      %145 = tpu.memref_slice %arg3[%144, %c0_i32_94] : memref<512x128xf32, #tpu.memory_space<any>> -> memref<1x128xf32, #tpu.memory_space<any>>
      %c7_i32_95 = arith.constant 7 : i32
      %c0_i32_96 = arith.constant 0 : i32
      %146 = tpu.memref_slice %arg6[%76, %c7_i32_95, %c0_i32_96] : memref<2x8x128xf32, #tpu.memory_space<vmem>> -> memref<1x1x128xf32, #tpu.memory_space<vmem>>
      %147 = tpu.memref_squeeze %146 : memref<1x1x128xf32, #tpu.memory_space<vmem>> -> memref<1x128xf32, #tpu.memory_space<vmem>>
      %148 = tpu.memref_slice %arg7[%76, %c7_i32_93] : memref<2x8x!tpu.dma_semaphore, #tpu.memory_space<semaphore_mem>> -> memref<1x1x!tpu.dma_semaphore, #tpu.memory_space<semaphore_mem>>
      %149 = tpu.memref_squeeze %148 : memref<1x1x!tpu.dma_semaphore, #tpu.memory_space<semaphore_mem>> -> memref<!tpu.dma_semaphore, #tpu.memory_space<semaphore_mem>>
      tpu.enqueue_dma source(%145 : memref<1x128xf32, #tpu.memory_space<any>>) target(%147 : memref<1x128xf32, #tpu.memory_space<vmem>>) target_semaphore(%149 : memref<!tpu.dma_semaphore, #tpu.memory_space<semaphore_mem>>)
    } else {
    }
    %c0_i32_8 = arith.constant 0 : i32
    %c0_i32_9 = arith.constant 0 : i32
    %c0_i32_10 = arith.constant 0 : i32
    %17 = tpu.memref_slice %arg3[%c0_i32_9, %c0_i32_10] : memref<512x128xf32, #tpu.memory_space<any>> -> memref<1x128xf32, #tpu.memory_space<any>>
    %c0_i32_11 = arith.constant 0 : i32
    %c0_i32_12 = arith.constant 0 : i32
    %18 = tpu.memref_slice %arg6[%9, %c0_i32_11, %c0_i32_12] : memref<2x8x128xf32, #tpu.memory_space<vmem>> -> memref<1x1x128xf32, #tpu.memory_space<vmem>>
    %19 = tpu.memref_squeeze %18 : memref<1x1x128xf32, #tpu.memory_space<vmem>> -> memref<1x128xf32, #tpu.memory_space<vmem>>
    %20 = tpu.memref_slice %arg7[%9, %c0_i32_8] : memref<2x8x!tpu.dma_semaphore, #tpu.memory_space<semaphore_mem>> -> memref<1x1x!tpu.dma_semaphore, #tpu.memory_space<semaphore_mem>>
    %21 = tpu.memref_squeeze %20 : memref<1x1x!tpu.dma_semaphore, #tpu.memory_space<semaphore_mem>> -> memref<!tpu.dma_semaphore, #tpu.memory_space<semaphore_mem>>
    tpu.wait_dma2 semaphore(%21 : memref<!tpu.dma_semaphore, #tpu.memory_space<semaphore_mem>>) src(%17 : memref<1x128xf32, #tpu.memory_space<any>>) dst(%19 : memref<1x128xf32, #tpu.memory_space<vmem>>)
    %c1_i32_13 = arith.constant 1 : i32
    %c0_i32_14 = arith.constant 0 : i32
    %c0_i32_15 = arith.constant 0 : i32
    %22 = tpu.memref_slice %arg3[%c0_i32_14, %c0_i32_15] : memref<512x128xf32, #tpu.memory_space<any>> -> memref<1x128xf32, #tpu.memory_space<any>>
    %c1_i32_16 = arith.constant 1 : i32
    %c0_i32_17 = arith.constant 0 : i32
    %23 = tpu.memref_slice %arg6[%9, %c1_i32_16, %c0_i32_17] : memref<2x8x128xf32, #tpu.memory_space<vmem>> -> memref<1x1x128xf32, #tpu.memory_space<vmem>>
    %24 = tpu.memref_squeeze %23 : memref<1x1x128xf32, #tpu.memory_space<vmem>> -> memref<1x128xf32, #tpu.memory_space<vmem>>
    %25 = tpu.memref_slice %arg7[%9, %c1_i32_13] : memref<2x8x!tpu.dma_semaphore, #tpu.memory_space<semaphore_mem>> -> memref<1x1x!tpu.dma_semaphore, #tpu.memory_space<semaphore_mem>>
    %26 = tpu.memref_squeeze %25 : memref<1x1x!tpu.dma_semaphore, #tpu.memory_space<semaphore_mem>> -> memref<!tpu.dma_semaphore, #tpu.memory_space<semaphore_mem>>
    tpu.wait_dma2 semaphore(%26 : memref<!tpu.dma_semaphore, #tpu.memory_space<semaphore_mem>>) src(%22 : memref<1x128xf32, #tpu.memory_space<any>>) dst(%24 : memref<1x128xf32, #tpu.memory_space<vmem>>)
    %c2_i32_18 = arith.constant 2 : i32
    %c0_i32_19 = arith.constant 0 : i32
    %c0_i32_20 = arith.constant 0 : i32
    %27 = tpu.memref_slice %arg3[%c0_i32_19, %c0_i32_20] : memref<512x128xf32, #tpu.memory_space<any>> -> memref<1x128xf32, #tpu.memory_space<any>>
    %c2_i32_21 = arith.constant 2 : i32
    %c0_i32_22 = arith.constant 0 : i32
    %28 = tpu.memref_slice %arg6[%9, %c2_i32_21, %c0_i32_22] : memref<2x8x128xf32, #tpu.memory_space<vmem>> -> memref<1x1x128xf32, #tpu.memory_space<vmem>>
    %29 = tpu.memref_squeeze %28 : memref<1x1x128xf32, #tpu.memory_space<vmem>> -> memref<1x128xf32, #tpu.memory_space<vmem>>
    %30 = tpu.memref_slice %arg7[%9, %c2_i32_18] : memref<2x8x!tpu.dma_semaphore, #tpu.memory_space<semaphore_mem>> -> memref<1x1x!tpu.dma_semaphore, #tpu.memory_space<semaphore_mem>>
    %31 = tpu.memref_squeeze %30 : memref<1x1x!tpu.dma_semaphore, #tpu.memory_space<semaphore_mem>> -> memref<!tpu.dma_semaphore, #tpu.memory_space<semaphore_mem>>
    tpu.wait_dma2 semaphore(%31 : memref<!tpu.dma_semaphore, #tpu.memory_space<semaphore_mem>>) src(%27 : memref<1x128xf32, #tpu.memory_space<any>>) dst(%29 : memref<1x128xf32, #tpu.memory_space<vmem>>)
    %c3_i32 = arith.constant 3 : i32
    %c0_i32_23 = arith.constant 0 : i32
    %c0_i32_24 = arith.constant 0 : i32
    %32 = tpu.memref_slice %arg3[%c0_i32_23, %c0_i32_24] : memref<512x128xf32, #tpu.memory_space<any>> -> memref<1x128xf32, #tpu.memory_space<any>>
    %c3_i32_25 = arith.constant 3 : i32
    %c0_i32_26 = arith.constant 0 : i32
    %33 = tpu.memref_slice %arg6[%9, %c3_i32_25, %c0_i32_26] : memref<2x8x128xf32, #tpu.memory_space<vmem>> -> memref<1x1x128xf32, #tpu.memory_space<vmem>>
    %34 = tpu.memref_squeeze %33 : memref<1x1x128xf32, #tpu.memory_space<vmem>> -> memref<1x128xf32, #tpu.memory_space<vmem>>
    %35 = tpu.memref_slice %arg7[%9, %c3_i32] : memref<2x8x!tpu.dma_semaphore, #tpu.memory_space<semaphore_mem>> -> memref<1x1x!tpu.dma_semaphore, #tpu.memory_space<semaphore_mem>>
    %36 = tpu.memref_squeeze %35 : memref<1x1x!tpu.dma_semaphore, #tpu.memory_space<semaphore_mem>> -> memref<!tpu.dma_semaphore, #tpu.memory_space<semaphore_mem>>
    tpu.wait_dma2 semaphore(%36 : memref<!tpu.dma_semaphore, #tpu.memory_space<semaphore_mem>>) src(%32 : memref<1x128xf32, #tpu.memory_space<any>>) dst(%34 : memref<1x128xf32, #tpu.memory_space<vmem>>)
    %c4_i32 = arith.constant 4 : i32
    %c0_i32_27 = arith.constant 0 : i32
    %c0_i32_28 = arith.constant 0 : i32
    %37 = tpu.memref_slice %arg3[%c0_i32_27, %c0_i32_28] : memref<512x128xf32, #tpu.memory_space<any>> -> memref<1x128xf32, #tpu.memory_space<any>>
    %c4_i32_29 = arith.constant 4 : i32
    %c0_i32_30 = arith.constant 0 : i32
    %38 = tpu.memref_slice %arg6[%9, %c4_i32_29, %c0_i32_30] : memref<2x8x128xf32, #tpu.memory_space<vmem>> -> memref<1x1x128xf32, #tpu.memory_space<vmem>>
    %39 = tpu.memref_squeeze %38 : memref<1x1x128xf32, #tpu.memory_space<vmem>> -> memref<1x128xf32, #tpu.memory_space<vmem>>
    %40 = tpu.memref_slice %arg7[%9, %c4_i32] : memref<2x8x!tpu.dma_semaphore, #tpu.memory_space<semaphore_mem>> -> memref<1x1x!tpu.dma_semaphore, #tpu.memory_space<semaphore_mem>>
    %41 = tpu.memref_squeeze %40 : memref<1x1x!tpu.dma_semaphore, #tpu.memory_space<semaphore_mem>> -> memref<!tpu.dma_semaphore, #tpu.memory_space<semaphore_mem>>
    tpu.wait_dma2 semaphore(%41 : memref<!tpu.dma_semaphore, #tpu.memory_space<semaphore_mem>>) src(%37 : memref<1x128xf32, #tpu.memory_space<any>>) dst(%39 : memref<1x128xf32, #tpu.memory_space<vmem>>)
    %c5_i32 = arith.constant 5 : i32
    %c0_i32_31 = arith.constant 0 : i32
    %c0_i32_32 = arith.constant 0 : i32
    %42 = tpu.memref_slice %arg3[%c0_i32_31, %c0_i32_32] : memref<512x128xf32, #tpu.memory_space<any>> -> memref<1x128xf32, #tpu.memory_space<any>>
    %c5_i32_33 = arith.constant 5 : i32
    %c0_i32_34 = arith.constant 0 : i32
    %43 = tpu.memref_slice %arg6[%9, %c5_i32_33, %c0_i32_34] : memref<2x8x128xf32, #tpu.memory_space<vmem>> -> memref<1x1x128xf32, #tpu.memory_space<vmem>>
    %44 = tpu.memref_squeeze %43 : memref<1x1x128xf32, #tpu.memory_space<vmem>> -> memref<1x128xf32, #tpu.memory_space<vmem>>
    %45 = tpu.memref_slice %arg7[%9, %c5_i32] : memref<2x8x!tpu.dma_semaphore, #tpu.memory_space<semaphore_mem>> -> memref<1x1x!tpu.dma_semaphore, #tpu.memory_space<semaphore_mem>>
    %46 = tpu.memref_squeeze %45 : memref<1x1x!tpu.dma_semaphore, #tpu.memory_space<semaphore_mem>> -> memref<!tpu.dma_semaphore, #tpu.memory_space<semaphore_mem>>
    tpu.wait_dma2 semaphore(%46 : memref<!tpu.dma_semaphore, #tpu.memory_space<semaphore_mem>>) src(%42 : memref<1x128xf32, #tpu.memory_space<any>>) dst(%44 : memref<1x128xf32, #tpu.memory_space<vmem>>)
    %c6_i32 = arith.constant 6 : i32
    %c0_i32_35 = arith.constant 0 : i32
    %c0_i32_36 = arith.constant 0 : i32
    %47 = tpu.memref_slice %arg3[%c0_i32_35, %c0_i32_36] : memref<512x128xf32, #tpu.memory_space<any>> -> memref<1x128xf32, #tpu.memory_space<any>>
    %c6_i32_37 = arith.constant 6 : i32
    %c0_i32_38 = arith.constant 0 : i32
    %48 = tpu.memref_slice %arg6[%9, %c6_i32_37, %c0_i32_38] : memref<2x8x128xf32, #tpu.memory_space<vmem>> -> memref<1x1x128xf32, #tpu.memory_space<vmem>>
    %49 = tpu.memref_squeeze %48 : memref<1x1x128xf32, #tpu.memory_space<vmem>> -> memref<1x128xf32, #tpu.memory_space<vmem>>
    %50 = tpu.memref_slice %arg7[%9, %c6_i32] : memref<2x8x!tpu.dma_semaphore, #tpu.memory_space<semaphore_mem>> -> memref<1x1x!tpu.dma_semaphore, #tpu.memory_space<semaphore_mem>>
    %51 = tpu.memref_squeeze %50 : memref<1x1x!tpu.dma_semaphore, #tpu.memory_space<semaphore_mem>> -> memref<!tpu.dma_semaphore, #tpu.memory_space<semaphore_mem>>
    tpu.wait_dma2 semaphore(%51 : memref<!tpu.dma_semaphore, #tpu.memory_space<semaphore_mem>>) src(%47 : memref<1x128xf32, #tpu.memory_space<any>>) dst(%49 : memref<1x128xf32, #tpu.memory_space<vmem>>)
    %c7_i32 = arith.constant 7 : i32
    %c0_i32_39 = arith.constant 0 : i32
    %c0_i32_40 = arith.constant 0 : i32
    %52 = tpu.memref_slice %arg3[%c0_i32_39, %c0_i32_40] : memref<512x128xf32, #tpu.memory_space<any>> -> memref<1x128xf32, #tpu.memory_space<any>>
    %c7_i32_41 = arith.constant 7 : i32
    %c0_i32_42 = arith.constant 0 : i32
    %53 = tpu.memref_slice %arg6[%9, %c7_i32_41, %c0_i32_42] : memref<2x8x128xf32, #tpu.memory_space<vmem>> -> memref<1x1x128xf32, #tpu.memory_space<vmem>>
    %54 = tpu.memref_squeeze %53 : memref<1x1x128xf32, #tpu.memory_space<vmem>> -> memref<1x128xf32, #tpu.memory_space<vmem>>
    %55 = tpu.memref_slice %arg7[%9, %c7_i32] : memref<2x8x!tpu.dma_semaphore, #tpu.memory_space<semaphore_mem>> -> memref<1x1x!tpu.dma_semaphore, #tpu.memory_space<semaphore_mem>>
    %56 = tpu.memref_squeeze %55 : memref<1x1x!tpu.dma_semaphore, #tpu.memory_space<semaphore_mem>> -> memref<!tpu.dma_semaphore, #tpu.memory_space<semaphore_mem>>
    tpu.wait_dma2 semaphore(%56 : memref<!tpu.dma_semaphore, #tpu.memory_space<semaphore_mem>>) src(%52 : memref<1x128xf32, #tpu.memory_space<any>>) dst(%54 : memref<1x128xf32, #tpu.memory_space<vmem>>)
    %57 = arith.index_cast %9 : i32 to index
    %c0 = arith.constant 0 : index
    %c0_43 = arith.constant 0 : index
    %58 = vector.load %arg6[%57, %c0, %c0_43] : memref<2x8x128xf32, #tpu.memory_space<vmem>>, vector<1x8x128xf32>
    %59 = vector.shape_cast %58 : vector<1x8x128xf32> to vector<8x128xf32>
    %c0_44 = arith.constant 0 : index
    %c0_45 = arith.constant 0 : index
    %60 = vector.load %arg4[%c0_44, %c0_45] : memref<8x128xf32, #tpu.memory_space<vmem>>, vector<8x128xf32>
    %61 = arith.addf %59, %60 : vector<8x128xf32>
    %c0_46 = arith.constant 0 : index
    %c0_47 = arith.constant 0 : index
    %c0_48 = arith.constant 0 : index
    %62 = vector.load %arg5[%c0_46, %c0_47, %c0_48] : memref<1x8x128xf32, #tpu.memory_space<vmem>>, vector<1x8x128xf32>
    %63 = vector.shape_cast %62 : vector<1x8x128xf32> to vector<8x128xf32>
    %64 = vector.shape_cast %61 : vector<8x128xf32> to vector<1x8x128xf32>
    tpu.vector_store %arg5[%c0_46, %c0_47, %c0_48], %64 {strides = array<i32>} : memref<1x8x128xf32, #tpu.memory_space<vmem>>, vector<1x8x128xf32>,
    return
  }
  func.func @transform_1(%arg0: i32, %arg1: i32, %arg2: memref<2x8xi32, #tpu.memory_space<smem>>) -> (i32, i32) {
    %c0_i32 = arith.constant 0 : i32
    %c0_i32_0 = arith.constant 0 : i32
    return %arg1, %c0_i32 : i32, i32
  }
  func.func @transform_2(%arg0: i32, %arg1: i32, %arg2: memref<2x8xi32, #tpu.memory_space<smem>>) -> (i32, i32, i32) {
    %c0_i32 = arith.constant 0 : i32
    %c0_i32_0 = arith.constant 0 : i32
    return %arg0, %arg1, %c0_i32 : i32, i32, i32
  }
}

</mosaic_0001>

<llo_original>
// kernel: embedding_forward.1
$region0: #{embedding_forward.1}
  #allocation0 [shape = 'u32[]', space=smem, size = 0x4, offset = 0x4, fixed_abs, tag = 'smem constant byte address 0x4 - core index']
  #allocation1 [shape = 'u32[144,128]{1,0:T(1,128)}', space=vmem, size = 0x12000, scoped, tag = 'internal scratch']
  #allocation2 [shape = 'f32[2,8,128]{2,1,0:T(8,128)}', space=vmem, size = 0x2000, scoped, tag = 'scratch operand']
  #allocation3 [shape = 's32[16]{0}', space=sflag, size = 0x40, scoped, tag = 'scratch operand']
  #allocation4 [shape = 's32[1]{0}', space=sflag, size = 0x4, scoped, tag = 'scoped memory for embedding_forward.1']
  #allocation5 [shape = 'u8[1024]{0}', space=smem, size = 0x400, scoped, tag = 'prefetched SMEM operand 0']
  #allocation10 [shape = 's32[]', space=sflag, size = 0x4, offset = 0, fixed_abs, tag = 'sflag constant byte address 0x0 - dummy sync flag']
  #allocation11 [shape = 's32[]', space=sflag, size = 0x4, offset = 0, fixed_abs, tag = 'sflag constant byte address 0x0 - dummy sync flag']
  #allocation12 [shape = 'u32[]', space=smem, size = 0x4, offset = 0x44, fixed_abs, tag = 'smem constant byte address 0x44 - assertion arg 0']
  #allocation13 [shape = 'u32[]', space=smem, size = 0x4, offset = 0x48, fixed_abs, tag = 'smem constant byte address 0x48 - assertion arg 1']
  #allocation14 [shape = 's32[]', space=sflag, size = 0x4, offset = 0, fixed_abs, tag = 'sflag constant byte address 0x0 - dummy sync flag']
  #allocation15 [shape = 's32[]', space=sflag, size = 0x4, offset = 0, fixed_abs, tag = 'sflag constant byte address 0x0 - dummy sync flag']
  #allocation16 [shape = 's32[]', space=sflag, size = 0x4, offset = 0, fixed_abs, tag = 'sflag constant byte address 0x0 - dummy sync flag']
  #allocation17 [shape = 's32[]', space=sflag, size = 0x4, offset = 0, fixed_abs, tag = 'sflag constant byte address 0x0 - dummy sync flag']
  #allocation18 [shape = 's32[]', space=sflag, size = 0x4, offset = 0, fixed_abs, tag = 'sflag constant byte address 0x0 - dummy sync flag']
  #allocation19 [shape = 's32[]', space=sflag, size = 0x4, offset = 0, fixed_abs, tag = 'sflag constant byte address 0x0 - dummy sync flag']
  #allocation20 [shape = 's32[]', space=sflag, size = 0x4, offset = 0, fixed_abs, tag = 'sflag constant byte address 0x0 - dummy sync flag']
  #allocation21 [shape = 's32[]', space=sflag, size = 0x4, offset = 0, fixed_abs, tag = 'sflag constant byte address 0x0 - dummy sync flag']
  #allocation22 [shape = 's32[]', space=sflag, size = 0x4, offset = 0, fixed_abs, tag = 'sflag constant byte address 0x0 - dummy sync flag']
  #allocation23 [shape = 's32[]', space=sflag, size = 0x4, offset = 0, fixed_abs, tag = 'sflag constant byte address 0x0 - dummy sync flag']
  #allocation24 [shape = 's32[]', space=sflag, size = 0x4, offset = 0, fixed_abs, tag = 'sflag constant byte address 0x0 - dummy sync flag']
  #allocation25 [shape = 's32[]', space=sflag, size = 0x4, offset = 0, fixed_abs, tag = 'sflag constant byte address 0x0 - dummy sync flag']
  #allocation26 [shape = 's32[]', space=sflag, size = 0x4, offset = 0, fixed_abs, tag = 'sflag constant byte address 0x0 - dummy sync flag']
  #allocation27 [shape = 's32[]', space=sflag, size = 0x4, offset = 0, fixed_abs, tag = 'sflag constant byte address 0x0 - dummy sync flag']
  #allocation28 [shape = 's32[]', space=sflag, size = 0x4, offset = 0, fixed_abs, tag = 'sflag constant byte address 0x0 - dummy sync flag']
  #allocation29 [shape = 's32[]', space=sflag, size = 0x4, offset = 0, fixed_abs, tag = 'sflag constant byte address 0x0 - dummy sync flag']
  #allocation30 [shape = 's32[]', space=sflag, size = 0x4, offset = 0, fixed_abs, tag = 'sflag constant byte address 0x0 - dummy sync flag']
  #allocation31 [shape = 's32[]', space=sflag, size = 0x4, offset = 0, fixed_abs, tag = 'sflag constant byte address 0x0 - dummy sync flag']
  #allocation32 [shape = 's32[]', space=sflag, size = 0x4, offset = 0, fixed_abs, tag = 'sflag constant byte address 0x0 - dummy sync flag']
  #allocation33 [shape = 's32[]', space=sflag, size = 0x4, offset = 0, fixed_abs, tag = 'sflag constant byte address 0x0 - dummy sync flag']
  #allocation34 [shape = 's32[]', space=sflag, size = 0x4, offset = 0, fixed_abs, tag = 'sflag constant byte address 0x0 - dummy sync flag']
  #allocation35 [shape = 's32[]', space=sflag, size = 0x4, offset = 0, fixed_abs, tag = 'sflag constant byte address 0x0 - dummy sync flag']
  #allocation36 [shape = 's32[]', space=sflag, size = 0x4, offset = 0, fixed_abs, tag = 'sflag constant byte address 0x0 - dummy sync flag']
  #allocation37 [shape = 's32[]', space=sflag, size = 0x4, offset = 0, fixed_abs, tag = 'sflag constant byte address 0x0 - dummy sync flag']
  #allocation38 [shape = 's32[]', space=sflag, size = 0x4, offset = 0, fixed_abs, tag = 'sflag constant byte address 0x0 - dummy sync flag']
  #allocation39 [shape = 's32[]', space=sflag, size = 0x4, offset = 0, fixed_abs, tag = 'sflag constant byte address 0x0 - dummy sync flag']
  #allocation40 [shape = 's32[]', space=sflag, size = 0x4, offset = 0, fixed_abs, tag = 'sflag constant byte address 0x0 - dummy sync flag']
  #allocation41 [shape = 's32[]', space=sflag, size = 0x4, offset = 0, fixed_abs, tag = 'sflag constant byte address 0x0 - dummy sync flag']
  #allocation42 [shape = 's32[]', space=sflag, size = 0x4, offset = 0, fixed_abs, tag = 'sflag constant byte address 0x0 - dummy sync flag']
  #allocation43 [shape = 's32[]', space=sflag, size = 0x4, offset = 0, fixed_abs, tag = 'sflag constant byte address 0x0 - dummy sync flag']
  %s0 = inlined_call_operand.hbm [shape: s32[2,8], index: 0, kind: input, shape index: {}]
  %s1 = inlined_call_operand.hbm [shape: f32[512,128], index: 1, kind: input, shape index: {}]
  %s2 = inlined_call_operand.hbm [shape: f32[16,128], index: 2, kind: input, shape index: {}]
  %s3 = inlined_call_operand.hbm [shape: f32[2,8,128], index: 3, kind: output, shape index: {}]
  %s4 = sld [smem:[#allocation0]]
  $region113: #{embedding_forward.1} parent=0
    _
  %s6 = ssub.s32 1, %s4
  %s7 = scalar_select 0, %s6, %s4
  %9 = dma.hbm_to_smem %s0, 32, [#allocation5], [#allocation4]
  %10 = dma.done [#allocation4], 32
  %11 = sfence
  $region1: #{embedding_forward.1} parent=0
    #allocation6 [shape = 'u8[4096]{0}', space=vmem, size = 0x1000, scoped, tag = 'input window, operand 2, single buffered']
    #allocation7 [shape = 's32[2]{0}', space=sflag, size = 0x8, scoped, tag = 'scoped memory for embedding_forward.1']
    #allocation8 [shape = 's32[2]{0}', space=sflag, size = 0x8, scoped, tag = 'scoped memory for embedding_forward.1']
    #allocation9 [shape = 'u8[8192]{0}', space=vmem, size = 0x2000, scoped, tag = 'output window, operand 0']
    %12 = vsyncpa [#allocation7], 0
    %13 = vsyncpa [#allocation8], 0
    %s14 = scalar_lea.sflag [#allocation8], 1
    %15 = vsyncpa %s14, 0
    loop: start=0, step=1, limit=4
    $region2: #{embedding_forward.1} parent=1 // loop_pre_header
      _
    $region3: #{embedding_forward.1} parent=1 // loop_header
      %s17 = sphi 0, %s21
      %p18 = scmp.ge.s32.totalorder %s17, 4
      %s24 = sphi 0, %s36
      %s25 = sphi 0, %s32
      %s26 = sphi 0, %s24
      %s27 = sphi 0, %s25
      %s28 = sphi 0, %s26
      %s29 = sphi 0, %s27
      %s39 = sphi 0, %s41
      %s42 = sphi 0, %s39
      %s43 = sphi 0, %s42
      %s59 = sphi 0, %s43
      %s67 = sphi 0, %s69
      %s70 = sphi 0, %s67
      %s71 = sphi 0, %s70
      %s87 = sphi 0, %s71
    $region4: #{embedding_forward.1} parent=1 // loop_header_branch
      %20 = sbr.rel (%p18) target = $region8
    $region5: #{embedding_forward.1} parent=1 // loop_body
      %s22 = ssub.s32 %s17, 1
      %s23 = ssub.s32 %s17, 2
      %s30 = sadd.s32 1, %s25
      %p31 = scmp.ge.s32.totalorder %s30, 1
      %s32 = scalar_select %p31, 0, %s30
      %s33 = sadd.s32 1, %s24
      %s34 = scalar_select %p31, %s33, %s24
      %p35 = scmp.ge.s32.totalorder %s34, 2
      %s36 = scalar_select %p35, 0, %s34
      %s37 = ssub.s32 %s25, %s32
      %p38 = scmp.eq.s32.totalorder %s37, 0
      %s40 = sadd.s32 %s39, 1
      %s41 = scalar_select %p38, %s39, %s40
      %p44 = pneg %p38
      %p45 = scmp.eq.s32.totalorder %s17, 1
      %p46 = por %p44, %p45
      %p47 = scmp.ne.s32.totalorder %s39, %s42
      %p48 = scmp.eq.s32.totalorder %s17, 0
      %p49 = por %p47, %p48
      %p50 = scmp.ne.s32.totalorder %s39, %s42
      %p51 = scmp.eq.s32.totalorder %s22, 1
      %p52 = por %p50, %p51
      %p53 = scmp.ne.s32.totalorder %s42, %s43
      %p54 = scmp.eq.s32.totalorder %s22, 0
      %p55 = por %p53, %p54
      %p56 = scmp.ne.s32.totalorder %s42, %s43
      %p57 = scmp.eq.s32.totalorder %s23, 1
      %p58 = por %p56, %p57
      %p60 = scmp.ne.s32.totalorder %s43, %s59
      %p61 = scmp.eq.s32.totalorder %s23, 0
      %p62 = por %p60, %p61
      %s63 = ssub.s32 %s24, %s36
      %s64 = ssub.s32 %s25, %s32
      %s65 = sor.u32 %s63, %s64
      %p66 = scmp.eq.s32.totalorder %s65, 0
      %s68 = sadd.s32 %s67, 1
      %s69 = scalar_select %p66, %s67, %s68
      %p72 = pneg %p66
      %p73 = scmp.eq.s32.totalorder %s17, 1
      %p74 = por %p72, %p73
      %p75 = scmp.ne.s32.totalorder %s67, %s70
      %p76 = scmp.eq.s32.totalorder %s17, 0
      %p77 = por %p75, %p76
      %p78 = scmp.ne.s32.totalorder %s67, %s70
      %p79 = scmp.eq.s32.totalorder %s22, 1
      %p80 = por %p78, %p79
      %p81 = scmp.ne.s32.totalorder %s70, %s71
      %p82 = scmp.eq.s32.totalorder %s22, 0
      %p83 = por %p81, %p82
      %p84 = scmp.ne.s32.totalorder %s70, %s71
      %p85 = scmp.eq.s32.totalorder %s23, 1
      %p86 = por %p84, %p85
      %p88 = scmp.ne.s32.totalorder %s71, %s87
      %p89 = scmp.eq.s32.totalorder %s23, 0
      %p90 = por %p88, %p89
      %p91 = scmp.le.s32.totalorder 1, %s17
      %p92 = scmp.lt.s32.totalorder %s17, 3
      %p93 = pnand %p91, %p92
      %p94 = pneg %p93
      // Predicated region
      $region9: #{embedding_forward.1} parent=5 // pred_check
        _
      $region10: #{embedding_forward.1} parent=5 // pred_check_branch
        %96 = sbr.rel (%p93) target = $region12
      $region11: #{embedding_forward.1} parent=5 // pred_region
        %s97 = ssub.s32 %s17, 1
        // Predicated region
        $region13: #{embedding_forward.1} parent=11 // pred_check
          %p98 = pneg %p55
        $region14: #{embedding_forward.1} parent=11 // pred_check_branch
          %100 = sbr.rel (%p98) target = $region16
        $region15: #{embedding_forward.1} parent=11 // pred_region
          %s102 = ssub.s32 128, 128
          %103 = vsyncadd [#allocation7], %s102
          %s104 = smul.addr %s27, 128
          %s105 = scalar_lea.hbm %s2, %s104
          %s107 = sshll.u32 [#allocation6], 4
          %s108 = int_to_ptr.vmem [resolvable:$true] %s107
          %110 = dma.hbm_to_vmem [thread:$0]  %s105, 128, %s108, [#allocation7]
        $region16: #{embedding_forward.1} parent=11 // pred_fallthru
          _
      $region12: #{embedding_forward.1} parent=5 // pred_fallthru
        _
      %p111 = scmp.lt.s32.totalorder %s17, 2
      // Predicated region
      $region17: #{embedding_forward.1} parent=5 // pred_check
        %p112 = pneg %p111
      $region18: #{embedding_forward.1} parent=5 // pred_check_branch
        %114 = sbr.rel (%p112) target = $region20
      $region19: #{embedding_forward.1} parent=5 // pred_region
        _
      $region20: #{embedding_forward.1} parent=5 // pred_fallthru
        _
      %p115 = scmp.le.s32.totalorder 1, %s17
      %p116 = scmp.lt.s32.totalorder %s17, 3
      %p117 = pnand %p115, %p116
      %p118 = pneg %p117
      // Predicated region
      $region21: #{embedding_forward.1} parent=5 // pred_check
        _
      $region22: #{embedding_forward.1} parent=5 // pred_check_branch
        %120 = sbr.rel (%p117) target = $region24
      $region23: #{embedding_forward.1} parent=5 // pred_region
        %s121 = ssub.s32 %s17, 1
        // Predicated region
        $region25: #{embedding_forward.1} parent=23 // pred_check
          %p122 = pneg %p55
        $region26: #{embedding_forward.1} parent=23 // pred_check_branch
          %124 = sbr.rel (%p122) target = $region28
        $region27: #{embedding_forward.1} parent=23 // pred_region
          %125 = dma.done [#allocation7], 128
        $region28: #{embedding_forward.1} parent=23 // pred_fallthru
          _
        %p126 = pneg %p55
        %p127 = pneg %p52
        %p128 = pneg %p83
        %p129 = pneg %p80
        %s130 = sand.u32 %s70, 1
        %s131 = scalar_lea.sflag [#allocation8], %s130
        %s132 = sand.u32 %s70, 1
        %s133 = smul.addr %s132, 8
        %s134 = scalar_lea.vmem [#allocation9], %s133
        %p135 = scmp.lt.s32.totalorder %s27, 0
        %s136 = ssub.s32 0, %s27
        %s137 = scalar_select %p135, %s136, %s27
        %s138 = sand.u32 %s137, 1
        %s139 = ssub.s32 0, %s138
        %s140 = scalar_select %p135, %s139, %s138
        %p141 = scmp.ne.s32.totalorder %s140, 0
        %p142 = scmp.lt.s32.totalorder %s140, 0
        %p143 = pnand %p142, %p141
        %p144 = pneg %p143
        %s145 = sadd.s32 %s140, 2
        %s146 = scalar_select %p144, %s145, %s140
        %p147 = scmp.eq.s32.totalorder %s27, 0
        // Predicated region
        $region29: #{embedding_forward.1} parent=23 // pred_check
          %p148 = pneg %p147
        $region30: #{embedding_forward.1} parent=23 // pred_check_branch
          %150 = sbr.rel (%p148) target = $region32
        $region31: #{embedding_forward.1} parent=23 // pred_region
          %s151 = smul.u32 %s26, 128
          %s152 = sld [smem:[#allocation5 + %s151]]
          %s153 = smul.addr %s152, 16
          %s154 = scalar_lea.hbm %s1, %s153
          // Predicated region
          $region33: #{embedding_forward.1} parent=31 // pred_check
            _
          $region34: #{embedding_forward.1} parent=31 // pred_check_branch
            %156 = sbr.rel target = $region36
          $region35: #{embedding_forward.1} parent=31 // pred_region
            %157 = sst [smem:[#allocation12]] [#allocation11]
            %158 = sst [smem:[#allocation13]] [#allocation10]
          $region36: #{embedding_forward.1} parent=31 // pred_fallthru
            _
          %160 = shalt.err (0)
          %s162 = sshll.u32 [#allocation2], 4
          %s163 = int_to_ptr.vmem [resolvable:$true] %s162
          %165 = dma.hbm_to_vmem [thread:$0]  %s154, 16, %s163, [#allocation3]
          %s166 = sadd.s32 %s151, 1
          %s167 = sld [smem:[#allocation5 + %s166]]
          %s168 = smul.addr %s167, 16
          %s169 = scalar_lea.hbm %s1, %s168
          %s170 = scalar_lea.vmem [#allocation2], 1
          %s171 = scalar_lea.sflag [#allocation3], 1
          // Predicated region
          $region37: #{embedding_forward.1} parent=31 // pred_check
            _
          $region38: #{embedding_forward.1} parent=31 // pred_check_branch
            %173 = sbr.rel target = $region40
          $region39: #{embedding_forward.1} parent=31 // pred_region
            %174 = sst [smem:[#allocation12]] [#allocation15]
            %175 = sst [smem:[#allocation13]] [#allocation14]
          $region40: #{embedding_forward.1} parent=31 // pred_fallthru
            _
          %177 = shalt.err (0)
          %s179 = sshll.u32 %s170, 4
          %s180 = int_to_ptr.vmem [resolvable:$true] %s179
          %182 = dma.hbm_to_vmem [thread:$0]  %s169, 16, %s180, %s171
          %s183 = sadd.s32 %s151, 2
          %s184 = sld [smem:[#allocation5 + %s183]]
          %s185 = smul.addr %s184, 16
          %s186 = scalar_lea.hbm %s1, %s185
          %s187 = scalar_lea.vmem [#allocation2], 2
          %s188 = scalar_lea.sflag [#allocation3], 2
          // Predicated region
          $region41: #{embedding_forward.1} parent=31 // pred_check
            _
          $region42: #{embedding_forward.1} parent=31 // pred_check_branch
            %190 = sbr.rel target = $region44
          $region43: #{embedding_forward.1} parent=31 // pred_region
            %191 = sst [smem:[#allocation12]] [#allocation17]
            %192 = sst [smem:[#allocation13]] [#allocation16]
          $region44: #{embedding_forward.1} parent=31 // pred_fallthru
            _
          %194 = shalt.err (0)
          %s196 = sshll.u32 %s187, 4
          %s197 = int_to_ptr.vmem [resolvable:$true] %s196
          %199 = dma.hbm_to_vmem [thread:$0]  %s186, 16, %s197, %s188
          %s200 = sadd.s32 %s151, 3
          %s201 = sld [smem:[#allocation5 + %s200]]
          %s202 = smul.addr %s201, 16
          %s203 = scalar_lea.hbm %s1, %s202
          %s204 = scalar_lea.vmem [#allocation2], 3
          %s205 = scalar_lea.sflag [#allocation3], 3
          // Predicated region
          $region45: #{embedding_forward.1} parent=31 // pred_check
            _
          $region46: #{embedding_forward.1} parent=31 // pred_check_branch
            %207 = sbr.rel target = $region48
          $region47: #{embedding_forward.1} parent=31 // pred_region
            %208 = sst [smem:[#allocation12]] [#allocation19]
            %209 = sst [smem:[#allocation13]] [#allocation18]
          $region48: #{embedding_forward.1} parent=31 // pred_fallthru
            _
          %211 = shalt.err (0)
          %s213 = sshll.u32 %s204, 4
          %s214 = int_to_ptr.vmem [resolvable:$true] %s213
          %216 = dma.hbm_to_vmem [thread:$0]  %s203, 16, %s214, %s205
          %s217 = sadd.s32 %s151, 4
          %s218 = sld [smem:[#allocation5 + %s217]]
          %s219 = smul.addr %s218, 16
          %s220 = scalar_lea.hbm %s1, %s219
          %s221 = scalar_lea.vmem [#allocation2], 4
          %s222 = scalar_lea.sflag [#allocation3], 4
          // Predicated region
          $region49: #{embedding_forward.1} parent=31 // pred_check
            _
          $region50: #{embedding_forward.1} parent=31 // pred_check_branch
            %224 = sbr.rel target = $region52
          $region51: #{embedding_forward.1} parent=31 // pred_region
            %225 = sst [smem:[#allocation12]] [#allocation21]
            %226 = sst [smem:[#allocation13]] [#allocation20]
          $region52: #{embedding_forward.1} parent=31 // pred_fallthru
            _
          %228 = shalt.err (0)
          %s230 = sshll.u32 %s221, 4
          %s231 = int_to_ptr.vmem [resolvable:$true] %s230
          %233 = dma.hbm_to_vmem [thread:$0]  %s220, 16, %s231, %s222
          %s234 = sadd.s32 %s151, 5
          %s235 = sld [smem:[#allocation5 + %s234]]
          %s236 = smul.addr %s235, 16
          %s237 = scalar_lea.hbm %s1, %s236
          %s238 = scalar_lea.vmem [#allocation2], 5
          %s239 = scalar_lea.sflag [#allocation3], 5
          // Predicated region
          $region53: #{embedding_forward.1} parent=31 // pred_check
            _
          $region54: #{embedding_forward.1} parent=31 // pred_check_branch
            %241 = sbr.rel target = $region56
          $region55: #{embedding_forward.1} parent=31 // pred_region
            %242 = sst [smem:[#allocation12]] [#allocation23]
            %243 = sst [smem:[#allocation13]] [#allocation22]
          $region56: #{embedding_forward.1} parent=31 // pred_fallthru
            _
          %245 = shalt.err (0)
          %s247 = sshll.u32 %s238, 4
          %s248 = int_to_ptr.vmem [resolvable:$true] %s247
          %250 = dma.hbm_to_vmem [thread:$0]  %s237, 16, %s248, %s239
          %s251 = sadd.s32 %s151, 6
          %s252 = sld [smem:[#allocation5 + %s251]]
          %s253 = smul.addr %s252, 16
          %s254 = scalar_lea.hbm %s1, %s253
          %s255 = scalar_lea.vmem [#allocation2], 6
          %s256 = scalar_lea.sflag [#allocation3], 6
          // Predicated region
          $region57: #{embedding_forward.1} parent=31 // pred_check
            _
          $region58: #{embedding_forward.1} parent=31 // pred_check_branch
            %258 = sbr.rel target = $region60
          $region59: #{embedding_forward.1} parent=31 // pred_region
            %259 = sst [smem:[#allocation12]] [#allocation25]
            %260 = sst [smem:[#allocation13]] [#allocation24]
          $region60: #{embedding_forward.1} parent=31 // pred_fallthru
            _
          %262 = shalt.err (0)
          %s264 = sshll.u32 %s255, 4
          %s265 = int_to_ptr.vmem [resolvable:$true] %s264
          %267 = dma.hbm_to_vmem [thread:$0]  %s254, 16, %s265, %s256
          %s268 = sadd.s32 %s151, 7
          %s269 = sld [smem:[#allocation5 + %s268]]
          %s270 = smul.addr %s269, 16
          %s271 = scalar_lea.hbm %s1, %s270
          %s272 = scalar_lea.vmem [#allocation2], 7
          %s273 = scalar_lea.sflag [#allocation3], 7
          // Predicated region
          $region61: #{embedding_forward.1} parent=31 // pred_check
            _
          $region62: #{embedding_forward.1} parent=31 // pred_check_branch
            %275 = sbr.rel target = $region64
          $region63: #{embedding_forward.1} parent=31 // pred_region
            %276 = sst [smem:[#allocation12]] [#allocation27]
            %277 = sst [smem:[#allocation13]] [#allocation26]
          $region64: #{embedding_forward.1} parent=31 // pred_fallthru
            _
          %279 = shalt.err (0)
          %s281 = sshll.u32 %s272, 4
          %s282 = int_to_ptr.vmem [resolvable:$true] %s281
          %284 = dma.hbm_to_vmem [thread:$0]  %s271, 16, %s282, %s273
        $region32: #{embedding_forward.1} parent=23 // pred_fallthru
          _
        %s285 = sadd.s32 %s27, 1
        %p286 = scmp.lt.s32.totalorder %s285, 1
        // Predicated region
        $region65: #{embedding_forward.1} parent=23 // pred_check
          %p287 = pneg %p286
        $region66: #{embedding_forward.1} parent=23 // pred_check_branch
          %289 = sbr.rel (%p287) target = $region68
        $region67: #{embedding_forward.1} parent=23 // pred_region
          %p290 = scmp.lt.s32.totalorder %s285, 0
          %s291 = ssub.s32 0, %s285
          %s292 = scalar_select %p290, %s291, %s285
          %s293 = sand.u32 %s292, 1
          %s294 = ssub.s32 0, %s293
          %s295 = scalar_select %p290, %s294, %s293
          %p296 = scmp.ne.s32.totalorder %s295, 0
          %p297 = scmp.lt.s32.totalorder %s295, 0
          %p298 = pnand %p297, %p296
          %p299 = pneg %p298
          %s300 = sadd.s32 %s295, 2
          %s301 = scalar_select %p299, %s300, %s295
          %s302 = smul.u32 %s285, 8
          %s303 = sshra.s32 %s302, 7
          %s304 = sand.u32 %s302, 127
          %s305 = sadd.s32 %s303, %s26
          %s306 = smul.u32 %s305, 128
          %s307 = sshra.s32 %s302, 7
          %s308 = sand.u32 %s302, 127
          %s309 = sadd.s32 %s306, %s308
          %s310 = sld [smem:[#allocation5 + %s309]]
          %s311 = smul.addr %s310, 16
          %s312 = scalar_lea.hbm %s1, %s311
          %s313 = smul.u32 %s301, 8
          %s314 = scalar_lea.vmem [#allocation2], %s313
          %s315 = scalar_lea.sflag [#allocation3], %s313
          // Predicated region
          $region69: #{embedding_forward.1} parent=67 // pred_check
            _
          $region70: #{embedding_forward.1} parent=67 // pred_check_branch
            %317 = sbr.rel target = $region72
          $region71: #{embedding_forward.1} parent=67 // pred_region
            %318 = sst [smem:[#allocation12]] [#allocation29]
            %319 = sst [smem:[#allocation13]] [#allocation28]
          $region72: #{embedding_forward.1} parent=67 // pred_fallthru
            _
          %321 = shalt.err (0)
          %s323 = sshll.u32 %s314, 4
          %s324 = int_to_ptr.vmem [resolvable:$true] %s323
          %326 = dma.hbm_to_vmem [thread:$0]  %s312, 16, %s324, %s315
          %s327 = sadd.s32 %s302, 1
          %s328 = sshra.s32 %s327, 7
          %s329 = sand.u32 %s327, 127
          %s330 = sadd.s32 %s328, %s26
          %s331 = smul.u32 %s330, 128
          %s332 = sshra.s32 %s327, 7
          %s333 = sand.u32 %s327, 127
          %s334 = sadd.s32 %s331, %s333
          %s335 = sld [smem:[#allocation5 + %s334]]
          %s336 = smul.addr %s335, 16
          %s337 = scalar_lea.hbm %s1, %s336
          %s338 = sadd.s32 1, %s313
          %s339 = scalar_lea.vmem [#allocation2], %s338
          %s340 = scalar_lea.sflag [#allocation3], %s338
          // Predicated region
          $region73: #{embedding_forward.1} parent=67 // pred_check
            _
          $region74: #{embedding_forward.1} parent=67 // pred_check_branch
            %342 = sbr.rel target = $region76
          $region75: #{embedding_forward.1} parent=67 // pred_region
            %343 = sst [smem:[#allocation12]] [#allocation31]
            %344 = sst [smem:[#allocation13]] [#allocation30]
          $region76: #{embedding_forward.1} parent=67 // pred_fallthru
            _
          %346 = shalt.err (0)
          %s348 = sshll.u32 %s339, 4
          %s349 = int_to_ptr.vmem [resolvable:$true] %s348
          %351 = dma.hbm_to_vmem [thread:$0]  %s337, 16, %s349, %s340
          %s352 = sadd.s32 %s302, 2
          %s353 = sshra.s32 %s352, 7
          %s354 = sand.u32 %s352, 127
          %s355 = sadd.s32 %s353, %s26
          %s356 = smul.u32 %s355, 128
          %s357 = sshra.s32 %s352, 7
          %s358 = sand.u32 %s352, 127
          %s359 = sadd.s32 %s356, %s358
          %s360 = sld [smem:[#allocation5 + %s359]]
          %s361 = smul.addr %s360, 16
          %s362 = scalar_lea.hbm %s1, %s361
          %s363 = sadd.s32 2, %s313
          %s364 = scalar_lea.vmem [#allocation2], %s363
          %s365 = scalar_lea.sflag [#allocation3], %s363
          // Predicated region
          $region77: #{embedding_forward.1} parent=67 // pred_check
            _
          $region78: #{embedding_forward.1} parent=67 // pred_check_branch
            %367 = sbr.rel target = $region80
          $region79: #{embedding_forward.1} parent=67 // pred_region
            %368 = sst [smem:[#allocation12]] [#allocation33]
            %369 = sst [smem:[#allocation13]] [#allocation32]
          $region80: #{embedding_forward.1} parent=67 // pred_fallthru
            _
          %371 = shalt.err (0)
          %s373 = sshll.u32 %s364, 4
          %s374 = int_to_ptr.vmem [resolvable:$true] %s373
          %376 = dma.hbm_to_vmem [thread:$0]  %s362, 16, %s374, %s365
          %s377 = sadd.s32 %s302, 3
          %s378 = sshra.s32 %s377, 7
          %s379 = sand.u32 %s377, 127
          %s380 = sadd.s32 %s378, %s26
          %s381 = smul.u32 %s380, 128
          %s382 = sshra.s32 %s377, 7
          %s383 = sand.u32 %s377, 127
          %s384 = sadd.s32 %s381, %s383
          %s385 = sld [smem:[#allocation5 + %s384]]
          %s386 = smul.addr %s385, 16
          %s387 = scalar_lea.hbm %s1, %s386
          %s388 = sadd.s32 3, %s313
          %s389 = scalar_lea.vmem [#allocation2], %s388
          %s390 = scalar_lea.sflag [#allocation3], %s388
          // Predicated region
          $region81: #{embedding_forward.1} parent=67 // pred_check
            _
          $region82: #{embedding_forward.1} parent=67 // pred_check_branch
            %392 = sbr.rel target = $region84
          $region83: #{embedding_forward.1} parent=67 // pred_region
            %393 = sst [smem:[#allocation12]] [#allocation35]
            %394 = sst [smem:[#allocation13]] [#allocation34]
          $region84: #{embedding_forward.1} parent=67 // pred_fallthru
            _
          %396 = shalt.err (0)
          %s398 = sshll.u32 %s389, 4
          %s399 = int_to_ptr.vmem [resolvable:$true] %s398
          %401 = dma.hbm_to_vmem [thread:$0]  %s387, 16, %s399, %s390
          %s402 = sadd.s32 %s302, 4
          %s403 = sshra.s32 %s402, 7
          %s404 = sand.u32 %s402, 127
          %s405 = sadd.s32 %s403, %s26
          %s406 = smul.u32 %s405, 128
          %s407 = sshra.s32 %s402, 7
          %s408 = sand.u32 %s402, 127
          %s409 = sadd.s32 %s406, %s408
          %s410 = sld [smem:[#allocation5 + %s409]]
          %s411 = smul.addr %s410, 16
          %s412 = scalar_lea.hbm %s1, %s411
          %s413 = sadd.s32 4, %s313
          %s414 = scalar_lea.vmem [#allocation2], %s413
          %s415 = scalar_lea.sflag [#allocation3], %s413
          // Predicated region
          $region85: #{embedding_forward.1} parent=67 // pred_check
            _
          $region86: #{embedding_forward.1} parent=67 // pred_check_branch
            %417 = sbr.rel target = $region88
          $region87: #{embedding_forward.1} parent=67 // pred_region
            %418 = sst [smem:[#allocation12]] [#allocation37]
            %419 = sst [smem:[#allocation13]] [#allocation36]
          $region88: #{embedding_forward.1} parent=67 // pred_fallthru
            _
          %421 = shalt.err (0)
          %s423 = sshll.u32 %s414, 4
          %s424 = int_to_ptr.vmem [resolvable:$true] %s423
          %426 = dma.hbm_to_vmem [thread:$0]  %s412, 16, %s424, %s415
          %s427 = sadd.s32 %s302, 5
          %s428 = sshra.s32 %s427, 7
          %s429 = sand.u32 %s427, 127
          %s430 = sadd.s32 %s428, %s26
          %s431 = smul.u32 %s430, 128
          %s432 = sshra.s32 %s427, 7
          %s433 = sand.u32 %s427, 127
          %s434 = sadd.s32 %s431, %s433
          %s435 = sld [smem:[#allocation5 + %s434]]
          %s436 = smul.addr %s435, 16
          %s437 = scalar_lea.hbm %s1, %s436
          %s438 = sadd.s32 5, %s313
          %s439 = scalar_lea.vmem [#allocation2], %s438
          %s440 = scalar_lea.sflag [#allocation3], %s438
          // Predicated region
          $region89: #{embedding_forward.1} parent=67 // pred_check
            _
          $region90: #{embedding_forward.1} parent=67 // pred_check_branch
            %442 = sbr.rel target = $region92
          $region91: #{embedding_forward.1} parent=67 // pred_region
            %443 = sst [smem:[#allocation12]] [#allocation39]
            %444 = sst [smem:[#allocation13]] [#allocation38]
          $region92: #{embedding_forward.1} parent=67 // pred_fallthru
            _
          %446 = shalt.err (0)
          %s448 = sshll.u32 %s439, 4
          %s449 = int_to_ptr.vmem [resolvable:$true] %s448
          %451 = dma.hbm_to_vmem [thread:$0]  %s437, 16, %s449, %s440
          %s452 = sadd.s32 %s302, 6
          %s453 = sshra.s32 %s452, 7
          %s454 = sand.u32 %s452, 127
          %s455 = sadd.s32 %s453, %s26
          %s456 = smul.u32 %s455, 128
          %s457 = sshra.s32 %s452, 7
          %s458 = sand.u32 %s452, 127
          %s459 = sadd.s32 %s456, %s458
          %s460 = sld [smem:[#allocation5 + %s459]]
          %s461 = smul.addr %s460, 16
          %s462 = scalar_lea.hbm %s1, %s461
          %s463 = sadd.s32 6, %s313
          %s464 = scalar_lea.vmem [#allocation2], %s463
          %s465 = scalar_lea.sflag [#allocation3], %s463
          // Predicated region
          $region93: #{embedding_forward.1} parent=67 // pred_check
            _
          $region94: #{embedding_forward.1} parent=67 // pred_check_branch
            %467 = sbr.rel target = $region96
          $region95: #{embedding_forward.1} parent=67 // pred_region
            %468 = sst [smem:[#allocation12]] [#allocation41]
            %469 = sst [smem:[#allocation13]] [#allocation40]
          $region96: #{embedding_forward.1} parent=67 // pred_fallthru
            _
          %471 = shalt.err (0)
          %s473 = sshll.u32 %s464, 4
          %s474 = int_to_ptr.vmem [resolvable:$true] %s473
          %476 = dma.hbm_to_vmem [thread:$0]  %s462, 16, %s474, %s465
          %s477 = sadd.s32 %s302, 7
          %s478 = sshra.s32 %s477, 7
          %s479 = sand.u32 %s477, 127
          %s480 = sadd.s32 %s478, %s26
          %s481 = smul.u32 %s480, 128
          %s482 = sshra.s32 %s477, 7
          %s483 = sand.u32 %s477, 127
          %s484 = sadd.s32 %s481, %s483
          %s485 = sld [smem:[#allocation5 + %s484]]
          %s486 = smul.addr %s485, 16
          %s487 = scalar_lea.hbm %s1, %s486
          %s488 = sadd.s32 7, %s313
          %s489 = scalar_lea.vmem [#allocation2], %s488
          %s490 = scalar_lea.sflag [#allocation3], %s488
          // Predicated region
          $region97: #{embedding_forward.1} parent=67 // pred_check
            _
          $region98: #{embedding_forward.1} parent=67 // pred_check_branch
            %492 = sbr.rel target = $region100
          $region99: #{embedding_forward.1} parent=67 // pred_region
            %493 = sst [smem:[#allocation12]] [#allocation43]
            %494 = sst [smem:[#allocation13]] [#allocation42]
          $region100: #{embedding_forward.1} parent=67 // pred_fallthru
            _
          %496 = shalt.err (0)
          %s498 = sshll.u32 %s489, 4
          %s499 = int_to_ptr.vmem [resolvable:$true] %s498
          %501 = dma.hbm_to_vmem [thread:$0]  %s487, 16, %s499, %s490
        $region68: #{embedding_forward.1} parent=23 // pred_fallthru
          _
        %s502 = smul.u32 %s146, 8
        %s503 = scalar_lea.sflag [#allocation3], %s502
        %s504 = smul.u32 1, 1
        %s505 = sshll.u32 %s504, 4
        %506 = dma.done %s503, %s505
        %s507 = sadd.s32 1, %s502
        %s508 = scalar_lea.sflag [#allocation3], %s507
        %s509 = sshll.u32 %s504, 4
        %510 = dma.done %s508, %s509
        %s511 = sadd.s32 2, %s502
        %s512 = scalar_lea.sflag [#allocation3], %s511
        %s513 = sshll.u32 %s504, 4
        %514 = dma.done %s512, %s513
        %s515 = sadd.s32 3, %s502
        %s516 = scalar_lea.sflag [#allocation3], %s515
        %s517 = sshll.u32 %s504, 4
        %518 = dma.done %s516, %s517
        %s519 = sadd.s32 4, %s502
        %s520 = scalar_lea.sflag [#allocation3], %s519
        %s521 = sshll.u32 %s504, 4
        %522 = dma.done %s520, %s521
        %s523 = sadd.s32 5, %s502
        %s524 = scalar_lea.sflag [#allocation3], %s523
        %s525 = sshll.u32 %s504, 4
        %526 = dma.done %s524, %s525
        %s527 = sadd.s32 6, %s502
        %s528 = scalar_lea.sflag [#allocation3], %s527
        %s529 = sshll.u32 %s504, 4
        %530 = dma.done %s528, %s529
        %s531 = sadd.s32 7, %s502
        %s532 = scalar_lea.sflag [#allocation3], %s531
        %s533 = sshll.u32 %s504, 4
        %534 = dma.done %s532, %s533
        %s535 = scalar_lea.vmem [#allocation2], %s502
        %v536 = vld [vmem:[%s535] sm:$0xff]
        %v537 = vld [vmem:[#allocation6] sm:$0xff]
        %v538 = vadd.f32 %v536, %v537
        %539 = vst [vmem:[%s134] sm:$0xff] %v538
        %s540 = sand.u32 %s70, 1
        %s541 = scalar_lea.sflag [#allocation8], %s540
        %s542 = sand.u32 %s70, 1
        %s543 = smul.addr %s542, 8
        %s544 = scalar_lea.vmem [#allocation9], %s543
        // Predicated region
        $region101: #{embedding_forward.1} parent=23 // pred_check
          %p545 = pneg %p80
        $region102: #{embedding_forward.1} parent=23 // pred_check_branch
          %547 = sbr.rel (%p545) target = $region104
        $region103: #{embedding_forward.1} parent=23 // pred_region
          %s549 = ssub.s32 128, 128
          %550 = vsyncadd %s541, %s549
          %s551 = sadd.s32 %s27, %s26
          %s552 = smul.addr %s551, 128
          %s553 = scalar_lea.hbm %s3, %s552
          %s555 = sshll.u32 %s544, 4
          %s556 = int_to_ptr.vmem [resolvable:$true] %s555
          %558 = dma.vmem_to_hbm [thread:$0]  %s556, 128, %s553, %s541
        $region104: #{embedding_forward.1} parent=23 // pred_fallthru
          _
      $region24: #{embedding_forward.1} parent=5 // pred_fallthru
        _
      %p559 = scmp.le.s32.totalorder 2, %s17
      // Predicated region
      $region105: #{embedding_forward.1} parent=5 // pred_check
        %p560 = pneg %p559
      $region106: #{embedding_forward.1} parent=5 // pred_check_branch
        %562 = sbr.rel (%p560) target = $region108
      $region107: #{embedding_forward.1} parent=5 // pred_region
        %s563 = ssub.s32 %s17, 2
        // Predicated region
        $region109: #{embedding_forward.1} parent=107 // pred_check
          %p564 = pneg %p86
        $region110: #{embedding_forward.1} parent=107 // pred_check_branch
          %566 = sbr.rel (%p564) target = $region112
        $region111: #{embedding_forward.1} parent=107 // pred_region
          %s567 = sand.u32 %s71, 1
          %s568 = scalar_lea.sflag [#allocation8], %s567
          %s569 = sand.u32 %s71, 1
          %s570 = smul.addr %s569, 8
          %s571 = scalar_lea.vmem [#allocation9], %s570
          %572 = dma.done %s568, 128
        $region112: #{embedding_forward.1} parent=107 // pred_fallthru
          _
      $region108: #{embedding_forward.1} parent=5 // pred_fallthru
        _
    $region6: #{embedding_forward.1} parent=1 // loop_footer
      %s21 = sadd.s32 1, %s17
    $region7: #{embedding_forward.1} parent=1 // loop_footer_branch
      %16 = sbr.rel target = $region3
    $region8: #{embedding_forward.1} parent=1 // loop_exit
      _
    %573 = vsyncpa [#allocation7], 1
    %s574 = scalar_lea.sflag [#allocation7], 1
    %575 = vsyncpa %s574, 1
    %576 = vsyncpa [#allocation8], 1
    %s577 = scalar_lea.sflag [#allocation8], 1
    %578 = vsyncpa %s577, 1
  %579 = vsyncmov [#allocation3]
  %s580 = vpop.sfrf %579
  %p581 = scmp.eq.s32.totalorder %s580, 0
  %p582 = pneg %p581
  %584 = shalt.err (%p582)
  %s585 = scalar_lea.sflag [#allocation3], 1
  %586 = vsyncmov %s585
  %s587 = vpop.sfrf %586
  %p588 = scmp.eq.s32.totalorder %s587, 0
  %p589 = pneg %p588
  %591 = shalt.err (%p589)
  %s592 = scalar_lea.sflag [#allocation3], 2
  %593 = vsyncmov %s592
  %s594 = vpop.sfrf %593
  %p595 = scmp.eq.s32.totalorder %s594, 0
  %p596 = pneg %p595
  %598 = shalt.err (%p596)
  %s599 = scalar_lea.sflag [#allocation3], 3
  %600 = vsyncmov %s599
  %s601 = vpop.sfrf %600
  %p602 = scmp.eq.s32.totalorder %s601, 0
  %p603 = pneg %p602
  %605 = shalt.err (%p603)
  %s606 = scalar_lea.sflag [#allocation3], 4
  %607 = vsyncmov %s606
  %s608 = vpop.sfrf %607
  %p609 = scmp.eq.s32.totalorder %s608, 0
  %p610 = pneg %p609
  %612 = shalt.err (%p610)
  %s613 = scalar_lea.sflag [#allocation3], 5
  %614 = vsyncmov %s613
  %s615 = vpop.sfrf %614
  %p616 = scmp.eq.s32.totalorder %s615, 0
  %p617 = pneg %p616
  %619 = shalt.err (%p617)
  %s620 = scalar_lea.sflag [#allocation3], 6
  %621 = vsyncmov %s620
  %s622 = vpop.sfrf %621
  %p623 = scmp.eq.s32.totalorder %s622, 0
  %p624 = pneg %p623
  %626 = shalt.err (%p624)
  %s627 = scalar_lea.sflag [#allocation3], 7
  %628 = vsyncmov %s627
  %s629 = vpop.sfrf %628
  %p630 = scmp.eq.s32.totalorder %s629, 0
  %p631 = pneg %p630
  %633 = shalt.err (%p631)
  %s634 = scalar_lea.sflag [#allocation3], 8
  %635 = vsyncmov %s634
  %s636 = vpop.sfrf %635
  %p637 = scmp.eq.s32.totalorder %s636, 0
  %p638 = pneg %p637
  %640 = shalt.err (%p638)
  %s641 = scalar_lea.sflag [#allocation3], 9
  %642 = vsyncmov %s641
  %s643 = vpop.sfrf %642
  %p644 = scmp.eq.s32.totalorder %s643, 0
  %p645 = pneg %p644
  %647 = shalt.err (%p645)
  %s648 = scalar_lea.sflag [#allocation3], 10
  %649 = vsyncmov %s648
  %s650 = vpop.sfrf %649
  %p651 = scmp.eq.s32.totalorder %s650, 0
  %p652 = pneg %p651
  %654 = shalt.err (%p652)
  %s655 = scalar_lea.sflag [#allocation3], 11
  %656 = vsyncmov %s655
  %s657 = vpop.sfrf %656
  %p658 = scmp.eq.s32.totalorder %s657, 0
  %p659 = pneg %p658
  %661 = shalt.err (%p659)
  %s662 = scalar_lea.sflag [#allocation3], 12
  %663 = vsyncmov %s662
  %s664 = vpop.sfrf %663
  %p665 = scmp.eq.s32.totalorder %s664, 0
  %p666 = pneg %p665
  %668 = shalt.err (%p666)
  %s669 = scalar_lea.sflag [#allocation3], 13
  %670 = vsyncmov %s669
  %s671 = vpop.sfrf %670
  %p672 = scmp.eq.s32.totalorder %s671, 0
  %p673 = pneg %p672
  %675 = shalt.err (%p673)
  %s676 = scalar_lea.sflag [#allocation3], 14
  %677 = vsyncmov %s676
  %s678 = vpop.sfrf %677
  %p679 = scmp.eq.s32.totalorder %s678, 0
  %p680 = pneg %p679
  %682 = shalt.err (%p680)
  %s683 = scalar_lea.sflag [#allocation3], 15
  %684 = vsyncmov %s683
  %s685 = vpop.sfrf %684
  %p686 = scmp.eq.s32.totalorder %s685, 0
  %p687 = pneg %p686
  %689 = shalt.err (%p687)

</llo_original>
